<compile_context>
chip_gen: v6e
topology: v6e:2x2x1
jax: 0.10.0
libtpu: 0.0.40
codegen_flags: <defaults>
</compile_context>

<pallas_src>
import jax
import jax.numpy as jnp
from jax.experimental import pallas as pl
from jax.experimental.pallas import tpu as pltpu

LANE = 128  # TPU lane width == padded PointNet feature width == fused head input width


def critic_kernel(pcd_ref, sa_ref,
                  pw1_ref, pb1_ref, pw2_ref, pb2_ref,
                  w1_ref, b1_ref, w2_ref, b2_ref, w3_ref, b3_ref,
                  wf_ref, bf_ref,
                  out_ref):
    R, C = pcd_ref.shape          # R = TB * N points in this batch tile
    TB = out_ref.shape[0]
    N = R // TB
    F = pw1_ref.shape[1]          # lane-padded PointNet feature width (128)

    # ---- PointNet layer 1: K=C(=3) contraction on the VPU as broadcast FMAs ----
    pts = pcd_ref[...]            # (R, C)
    pw1 = pw1_ref[...]            # (C, F)  (zero-padded lanes >= pcd_feat)
    h = pts[:, 0:1] * pw1[0:1, :] + pb1_ref[...]      # bias fused into first term
    for c in range(1, C):                             # C is tiny and static
        h = h + pts[:, c:c + 1] * pw1[c:c + 1, :]
    h = jnp.maximum(h, 0.0)                           # (R, F); padded lanes are exactly 0

    # ---- PointNet layer 2: lane-aligned K=128 MXU dot ----
    h = jnp.dot(h, pw2_ref[...], preferred_element_type=jnp.float32) + pb2_ref[...]
    h = jnp.maximum(h, 0.0)                           # padded lanes stay 0

    # ---- max-pool over points: sublane reduce, lane dim (128) unchanged ----
    feat = jnp.max(h.reshape(TB, N, F), axis=1)       # (TB, F)

    # ---- fused head layer: concat realized as add of disjoint-lane padded tensors,
    #      then a single K=128 MXU dot with the zero-padded W1 ----
    x = feat + sa_ref[...]                            # (TB, 128)
    x = jnp.maximum(jnp.dot(x, w1_ref[...], preferred_element_type=jnp.float32) + b1_ref[...], 0.0)
    x = jnp.maximum(jnp.dot(x, w2_ref[...], preferred_element_type=jnp.float32) + b2_ref[...], 0.0)
    x = jnp.maximum(jnp.dot(x, w3_ref[...], preferred_element_type=jnp.float32) + b3_ref[...], 0.0)

    # ---- final Linear(128 -> 1): VPU multiply + lane reduce (no N=1 MXU push);
    #      store a lane-dense (TB, 128) block, wrapper slices column 0 ----
    q = jnp.sum(x * wf_ref[...], axis=-1, keepdims=True) + bf_ref[...]   # (TB, 1)
    out_ref[...] = jnp.broadcast_to(q, out_ref.shape)


def make_params(key, pcd_channels=3, pcd_feat=64, state_dim=8, subgoal_dim=8,
                action_dim=4, mlp_dims=(512, 256, 128)):
    """Deterministic synthetic parameters (shapes follow the module's __init__)."""
    def lin(k, fan_in, fan_out):
        kw, kb = jax.random.split(k)
        scale = 1.0 / jnp.sqrt(jnp.float32(fan_in))
        w = jax.random.uniform(kw, (fan_in, fan_out), jnp.float32, -scale, scale)
        b = jax.random.uniform(kb, (1, fan_out), jnp.float32, -scale, scale)
        return w, b

    keys = jax.random.split(key, 6)
    p = {}
    # PointNet encoder (per-point MLP: C -> pcd_feat -> pcd_feat, then max-pool)
    p["pw1"], p["pb1"] = lin(keys[0], pcd_channels, pcd_feat)
    p["pw2"], p["pb2"] = lin(keys[1], pcd_feat, pcd_feat)
    # Critic MLP head on concat([feat, state, subgoal, action])
    input_dim = pcd_feat + state_dim + subgoal_dim + action_dim
    p["w1"], p["b1"] = lin(keys[2], input_dim, mlp_dims[0])
    p["w2"], p["b2"] = lin(keys[3], mlp_dims[0], mlp_dims[1])
    p["w3"], p["b3"] = lin(keys[4], mlp_dims[1], mlp_dims[2])
    p["wf"], p["bf"] = lin(keys[5], mlp_dims[2], 1)
    return p


def _pad_params(p):
    """Zero-pad PointNet feature width and head input width to 128 lanes (pure JAX)."""
    C, pcd_feat = p["pw1"].shape
    input_dim, d1 = p["w1"].shape
    assert pcd_feat <= LANE and input_dim <= LANE, "fused head requires input_dim <= 128"
    f32 = jnp.float32
    kp = {}
    kp["pw1"] = jnp.zeros((C, LANE), f32).at[:, :pcd_feat].set(p["pw1"])
    kp["pb1"] = jnp.zeros((1, LANE), f32).at[:, :pcd_feat].set(p["pb1"])
    kp["pw2"] = jnp.zeros((LANE, LANE), f32).at[:pcd_feat, :pcd_feat].set(p["pw2"])
    kp["pb2"] = jnp.zeros((1, LANE), f32).at[:, :pcd_feat].set(p["pb2"])
    kp["w1"] = jnp.zeros((LANE, d1), f32).at[:input_dim, :].set(p["w1"])
    kp["b1"] = p["b1"]
    kp["w2"], kp["b2"] = p["w2"], p["b2"]
    kp["w3"], kp["b3"] = p["w3"], p["b3"]
    kp["wf"] = p["wf"].T            # (1, mlp_dims[-1]) row for the VPU reduce
    kp["bf"] = p["bf"]              # (1, 1)
    return kp


def _pick_tile_b(B, N, max_rows_per_tile=4096):
    """VMEM-aware batch tile.

    Caps points-per-tile (TB * N) so the per-point activation slab stays a few MiB,
    and keeps TB a multiple of 8 whenever the grid has more than one block so every
    (TB, 128) block satisfies the (8, 128) sublane/lane constraint.
    """
    cap = max(1, max_rows_per_tile // max(N, 1))
    if B <= cap:
        return B                    # single block: block dims equal full array dims
    return max(8, (cap // 8) * 8)


def critic_forward(pcd, state, subgoal, action, params, *, tile_b=None):
    B, N, C = pcd.shape
    f32 = jnp.float32
    kp = _pad_params(params)
    pcd_feat = params["pw1"].shape[1]
    input_dim = params["w1"].shape[0]

    # Lane-padded (B, 128) "rest of the concat": feat will occupy lanes [0, pcd_feat),
    # state/subgoal/action occupy [pcd_feat, input_dim), tail lanes are zero.
    sa = jnp.concatenate(
        [jnp.zeros((B, pcd_feat), f32),
         state.astype(f32), subgoal.astype(f32), action.astype(f32),
         jnp.zeros((B, LANE - input_dim), f32)], axis=1)

    # Batch tiling (VMEM-aware); pad batch to a multiple of the tile.
    TB = tile_b if tile_b is not None else _pick_tile_b(B, N)
    n_blocks = int(pl.cdiv(B, TB))
    B_pad = n_blocks * TB

    pcd_flat = pcd.astype(f32).reshape(B * N, C)     # points on sublanes, channels on lanes
    if B_pad != B:
        pcd_flat = jnp.pad(pcd_flat, ((0, (B_pad - B) * N), (0, 0)))
        sa = jnp.pad(sa, ((0, B_pad - B), (0, 0)))

    weights = (kp["pw1"], kp["pb1"], kp["pw2"], kp["pb2"],
               kp["w1"], kp["b1"], kp["w2"], kp["b2"],
               kp["w3"], kp["b3"], kp["wf"], kp["bf"])

    def resident(a):
        # Weights: full block, constant index_map -> fetched once, stay resident in VMEM.
        return pl.BlockSpec(a.shape, lambda b: (0, 0))

    out = pl.pallas_call(
        critic_kernel,
        out_shape=jax.ShapeDtypeStruct((B_pad, LANE), f32),
        grid=(n_blocks,),
        in_specs=[pl.BlockSpec((TB * N, C), lambda b: (b, 0)),   # point-cloud tile
                  pl.BlockSpec((TB, LANE), lambda b: (b, 0))]    # lane-padded state/subgoal/action
                 + [resident(a) for a in weights],
        out_specs=pl.BlockSpec((TB, LANE), lambda b: (b, 0)),    # lane-dense output store
        compiler_params=pltpu.CompilerParams(
            dimension_semantics=("parallel",)),
    )(pcd_flat, sa, *weights)

    return out[:B, :1]


def critic_forward_ref(pcd, state, subgoal, action, p):
    """Pure-JAX reference for validation."""
    B, N, C = pcd.shape
    h = jnp.maximum(pcd.reshape(B * N, C) @ p["pw1"] + p["pb1"], 0.0)
    h = jnp.maximum(h @ p["pw2"] + p["pb2"], 0.0)
    feat = jnp.max(h.reshape(B, N, -1), axis=1)
    x = jnp.concatenate([feat, state, subgoal, action], axis=1)
    x = jnp.maximum(x @ p["w1"] + p["b1"], 0.0)
    x = jnp.maximum(x @ p["w2"] + p["b2"], 0.0)
    x = jnp.maximum(x @ p["w3"] + p["b3"], 0.0)
    return x @ p["wf"] + p["bf"]


if __name__ == "__main__":
    B, N_PTS, C = 2, 64, 3
    STATE_DIM, SUBGOAL_DIM, ACTION_DIM = 8, 8, 4

    key = jax.random.PRNGKey(0)
    k_pcd, k_state, k_sub, k_act, k_params = jax.random.split(key, 5)

    pcd     = jax.random.normal(k_pcd,   (B, N_PTS, C), jnp.float32)
    state   = jax.random.normal(k_state, (B, STATE_DIM), jnp.float32)
    subgoal = jax.random.normal(k_sub,   (B, SUBGOAL_DIM), jnp.float32)
    action  = jax.random.normal(k_act,   (B, ACTION_DIM), jnp.float32)

    params = make_params(k_params, pcd_channels=C, pcd_feat=64,
                         state_dim=STATE_DIM, subgoal_dim=SUBGOAL_DIM,
                         action_dim=ACTION_DIM, mlp_dims=(512, 256, 128))

    out = jax.block_until_ready(critic_forward(pcd, state, subgoal, action, params))
    ref = critic_forward_ref(pcd, state, subgoal, action, params)

    assert out.shape == (B, 1), out.shape
    assert jnp.allclose(out, ref, atol=1e-4, rtol=1e-4), (out, ref)

    print("KERNEL_OK")
</pallas_src>

<mosaic_0001>
module attributes {stable_mosaic.version = 11 : i64} {
  func.func @critic_kernel(%arg0: i32, %arg1: memref<128x3xf32, #tpu.memory_space<vmem>>, %arg2: memref<2x128xf32, #tpu.memory_space<vmem>>, %arg3: memref<3x128xf32, #tpu.memory_space<vmem>>, %arg4: memref<1x128xf32, #tpu.memory_space<vmem>>, %arg5: memref<128x128xf32, #tpu.memory_space<vmem>>, %arg6: memref<1x128xf32, #tpu.memory_space<vmem>>, %arg7: memref<128x512xf32, #tpu.memory_space<vmem>>, %arg8: memref<1x512xf32, #tpu.memory_space<vmem>>, %arg9: memref<512x256xf32, #tpu.memory_space<vmem>>, %arg10: memref<1x256xf32, #tpu.memory_space<vmem>>, %arg11: memref<256x128xf32, #tpu.memory_space<vmem>>, %arg12: memref<1x128xf32, #tpu.memory_space<vmem>>, %arg13: memref<1x128xf32, #tpu.memory_space<vmem>>, %arg14: memref<1x1xf32, #tpu.memory_space<vmem>>, %arg15: memref<2x128xf32, #tpu.memory_space<vmem>>) attributes {dimension_semantics = [#tpu.dimension_semantics<parallel>], iteration_bounds = array<i64: 1>, scalar_prefetch = 0 : i64, scratch_operands = 0 : i64, tpu.core_type = #tpu.core_type<tc>, window_params = [{transform_indices = @transform_0, window_bounds = array<i64: 128, 3>}, {transform_indices = @transform_1, window_bounds = array<i64: 2, 128>}, {pipeline_mode = #tpu.pipeline_mode<synchronous>, transform_indices = @transform_2, window_bounds = array<i64: 3, 128>}, {pipeline_mode = #tpu.pipeline_mode<synchronous>, transform_indices = @transform_3, window_bounds = array<i64: 1, 128>}, {pipeline_mode = #tpu.pipeline_mode<synchronous>, transform_indices = @transform_4, window_bounds = array<i64: 128, 128>}, {pipeline_mode = #tpu.pipeline_mode<synchronous>, transform_indices = @transform_5, window_bounds = array<i64: 1, 128>}, {pipeline_mode = #tpu.pipeline_mode<synchronous>, transform_indices = @transform_6, window_bounds = array<i64: 128, 512>}, {pipeline_mode = #tpu.pipeline_mode<synchronous>, transform_indices = @transform_7, window_bounds = array<i64: 1, 512>}, {pipeline_mode = #tpu.pipeline_mode<synchronous>, transform_indices = @transform_8, window_bounds = array<i64: 512, 256>}, {pipeline_mode = #tpu.pipeline_mode<synchronous>, transform_indices = @transform_9, window_bounds = array<i64: 1, 256>}, {pipeline_mode = #tpu.pipeline_mode<synchronous>, transform_indices = @transform_10, window_bounds = array<i64: 256, 128>}, {pipeline_mode = #tpu.pipeline_mode<synchronous>, transform_indices = @transform_11, window_bounds = array<i64: 1, 128>}, {pipeline_mode = #tpu.pipeline_mode<synchronous>, transform_indices = @transform_12, window_bounds = array<i64: 1, 128>}, {pipeline_mode = #tpu.pipeline_mode<synchronous>, transform_indices = @transform_13, window_bounds = array<i64: 1, 1>}, {transform_indices = @transform_14, window_bounds = array<i64: 2, 128>}]} {
    %c0 = arith.constant 0 : index
    %c0_0 = arith.constant 0 : index
    %0 = vector.load %arg1[%c0, %c0_0] : memref<128x3xf32, #tpu.memory_space<vmem>>, vector<128x3xf32>
    %c0_1 = arith.constant 0 : index
    %c0_2 = arith.constant 0 : index
    %1 = vector.load %arg3[%c0_1, %c0_2] : memref<3x128xf32, #tpu.memory_space<vmem>>, vector<3x128xf32>
    %2 = vector.extract_strided_slice %0 {offsets = [0, 0], sizes = [128, 1], strides = [1, 1]} : vector<128x3xf32> to vector<128x1xf32>
    %3 = vector.extract_strided_slice %1 {offsets = [0, 0], sizes = [1, 128], strides = [1, 1]} : vector<3x128xf32> to vector<1x128xf32>
    %4 = vector.broadcast %2 : vector<128x1xf32> to vector<128x128xf32>
    %5 = vector.broadcast %3 : vector<1x128xf32> to vector<128x128xf32>
    %6 = arith.mulf %4, %5 : vector<128x128xf32>
    %c0_3 = arith.constant 0 : index
    %c0_4 = arith.constant 0 : index
    %7 = vector.load %arg4[%c0_3, %c0_4] : memref<1x128xf32, #tpu.memory_space<vmem>>, vector<1x128xf32>
    %8 = vector.broadcast %7 : vector<1x128xf32> to vector<128x128xf32>
    %9 = arith.addf %6, %8 : vector<128x128xf32>
    %10 = vector.extract_strided_slice %0 {offsets = [0, 1], sizes = [128, 1], strides = [1, 1]} : vector<128x3xf32> to vector<128x1xf32>
    %11 = vector.extract_strided_slice %1 {offsets = [1, 0], sizes = [1, 128], strides = [1, 1]} : vector<3x128xf32> to vector<1x128xf32>
    %12 = vector.broadcast %10 : vector<128x1xf32> to vector<128x128xf32>
    %13 = vector.broadcast %11 : vector<1x128xf32> to vector<128x128xf32>
    %14 = arith.mulf %12, %13 : vector<128x128xf32>
    %15 = arith.addf %9, %14 : vector<128x128xf32>
    %16 = vector.extract_strided_slice %0 {offsets = [0, 2], sizes = [128, 1], strides = [1, 1]} : vector<128x3xf32> to vector<128x1xf32>
    %17 = vector.extract_strided_slice %1 {offsets = [2, 0], sizes = [1, 128], strides = [1, 1]} : vector<3x128xf32> to vector<1x128xf32>
    %18 = vector.broadcast %16 : vector<128x1xf32> to vector<128x128xf32>
    %19 = vector.broadcast %17 : vector<1x128xf32> to vector<128x128xf32>
    %20 = arith.mulf %18, %19 : vector<128x128xf32>
    %21 = arith.addf %15, %20 : vector<128x128xf32>
    %cst = arith.constant 0.000000e+00 : f32
    %22 = vector.broadcast %cst : f32 to vector<128x128xf32>
    %23 = arith.maximumf %21, %22 : vector<128x128xf32>
    %c0_5 = arith.constant 0 : index
    %c0_6 = arith.constant 0 : index
    %24 = vector.load %arg5[%c0_5, %c0_6] : memref<128x128xf32, #tpu.memory_space<vmem>>, vector<128x128xf32>
    %cst_7 = arith.constant dense<0.000000e+00> : vector<128x128xf32>
    %25 = tpu.matmul %23, %24, %cst_7 {dimension_numbers = #tpu.dot_dimension_numbers<[1], [0], [0], [1], [0, 0, 1, 1], [], []>} : vector<128x128xf32>, vector<128x128xf32>, vector<128x128xf32> -> vector<128x128xf32>
    %c0_8 = arith.constant 0 : index
    %c0_9 = arith.constant 0 : index
    %26 = vector.load %arg6[%c0_8, %c0_9] : memref<1x128xf32, #tpu.memory_space<vmem>>, vector<1x128xf32>
    %27 = vector.broadcast %26 : vector<1x128xf32> to vector<128x128xf32>
    %28 = arith.addf %25, %27 : vector<128x128xf32>
    %cst_10 = arith.constant 0.000000e+00 : f32
    %29 = vector.broadcast %cst_10 : f32 to vector<128x128xf32>
    %30 = arith.maximumf %28, %29 : vector<128x128xf32>
    %31 = vector.shape_cast %30 : vector<128x128xf32> to vector<2x64x128xf32>
    %cst_11 = arith.constant dense<0xFF800000> : vector<2x128xf32>
    %32 = vector.multi_reduction <maximumf>, %31, %cst_11 [1] : vector<2x64x128xf32> to vector<2x128xf32>
    %c0_12 = arith.constant 0 : index
    %c0_13 = arith.constant 0 : index
    %33 = vector.load %arg2[%c0_12, %c0_13] : memref<2x128xf32, #tpu.memory_space<vmem>>, vector<2x128xf32>
    %34 = arith.addf %32, %33 : vector<2x128xf32>
    %c0_14 = arith.constant 0 : index
    %c0_15 = arith.constant 0 : index
    %35 = vector.load %arg7[%c0_14, %c0_15] : memref<128x512xf32, #tpu.memory_space<vmem>>, vector<128x512xf32>
    %cst_16 = arith.constant dense<0.000000e+00> : vector<2x512xf32>
    %36 = tpu.matmul %34, %35, %cst_16 {dimension_numbers = #tpu.dot_dimension_numbers<[1], [0], [0], [1], [0, 0, 1, 1], [], []>} : vector<2x128xf32>, vector<128x512xf32>, vector<2x512xf32> -> vector<2x512xf32>
    %c0_17 = arith.constant 0 : index
    %c0_18 = arith.constant 0 : index
    %37 = vector.load %arg8[%c0_17, %c0_18] : memref<1x512xf32, #tpu.memory_space<vmem>>, vector<1x512xf32>
    %38 = vector.broadcast %37 : vector<1x512xf32> to vector<2x512xf32>
    %39 = arith.addf %36, %38 : vector<2x512xf32>
    %cst_19 = arith.constant 0.000000e+00 : f32
    %40 = vector.broadcast %cst_19 : f32 to vector<2x512xf32>
    %41 = arith.maximumf %39, %40 : vector<2x512xf32>
    %c0_20 = arith.constant 0 : index
    %c0_21 = arith.constant 0 : index
    %42 = vector.load %arg9[%c0_20, %c0_21] : memref<512x256xf32, #tpu.memory_space<vmem>>, vector<512x256xf32>
    %cst_22 = arith.constant dense<0.000000e+00> : vector<2x256xf32>
    %43 = tpu.matmul %41, %42, %cst_22 {dimension_numbers = #tpu.dot_dimension_numbers<[1], [0], [0], [1], [0, 0, 1, 1], [], []>} : vector<2x512xf32>, vector<512x256xf32>, vector<2x256xf32> -> vector<2x256xf32>
    %c0_23 = arith.constant 0 : index
    %c0_24 = arith.constant 0 : index
    %44 = vector.load %arg10[%c0_23, %c0_24] : memref<1x256xf32, #tpu.memory_space<vmem>>, vector<1x256xf32>
    %45 = vector.broadcast %44 : vector<1x256xf32> to vector<2x256xf32>
    %46 = arith.addf %43, %45 : vector<2x256xf32>
    %cst_25 = arith.constant 0.000000e+00 : f32
    %47 = vector.broadcast %cst_25 : f32 to vector<2x256xf32>
    %48 = arith.maximumf %46, %47 : vector<2x256xf32>
    %c0_26 = arith.constant 0 : index
    %c0_27 = arith.constant 0 : index
    %49 = vector.load %arg11[%c0_26, %c0_27] : memref<256x128xf32, #tpu.memory_space<vmem>>, vector<256x128xf32>
    %cst_28 = arith.constant dense<0.000000e+00> : vector<2x128xf32>
    %50 = tpu.matmul %48, %49, %cst_28 {dimension_numbers = #tpu.dot_dimension_numbers<[1], [0], [0], [1], [0, 0, 1, 1], [], []>} : vector<2x256xf32>, vector<256x128xf32>, vector<2x128xf32> -> vector<2x128xf32>
    %c0_29 = arith.constant 0 : index
    %c0_30 = arith.constant 0 : index
    %51 = vector.load %arg12[%c0_29, %c0_30] : memref<1x128xf32, #tpu.memory_space<vmem>>, vector<1x128xf32>
    %52 = vector.broadcast %51 : vector<1x128xf32> to vector<2x128xf32>
    %53 = arith.addf %50, %52 : vector<2x128xf32>
    %cst_31 = arith.constant 0.000000e+00 : f32
    %54 = vector.broadcast %cst_31 : f32 to vector<2x128xf32>
    %55 = arith.maximumf %53, %54 : vector<2x128xf32>
    %c0_32 = arith.constant 0 : index
    %c0_33 = arith.constant 0 : index
    %56 = vector.load %arg13[%c0_32, %c0_33] : memref<1x128xf32, #tpu.memory_space<vmem>>, vector<1x128xf32>
    %57 = vector.broadcast %56 : vector<1x128xf32> to vector<2x128xf32>
    %58 = arith.mulf %55, %57 : vector<2x128xf32>
    %cst_34 = arith.constant dense<0.000000e+00> : vector<2xf32>
    %59 = vector.multi_reduction <add>, %58, %cst_34 [1] : vector<2x128xf32> to vector<2xf32>
    %60 = vector.shape_cast %59 : vector<2xf32> to vector<2x1xf32>
    %c0_35 = arith.constant 0 : index
    %c0_36 = arith.constant 0 : index
    %61 = vector.load %arg14[%c0_35, %c0_36] : memref<1x1xf32, #tpu.memory_space<vmem>>, vector<1x1xf32>
    %62 = vector.broadcast %61 : vector<1x1xf32> to vector<2x1xf32>
    %63 = arith.addf %60, %62 : vector<2x1xf32>
    %64 = vector.shape_cast %63 : vector<2x1xf32> to vector<2x1xf32>
    %65 = vector.broadcast %64 : vector<2x1xf32> to vector<2x128xf32>
    %c0_37 = arith.constant 0 : index
    %c0_38 = arith.constant 0 : index
    %66 = vector.load %arg15[%c0_37, %c0_38] : memref<2x128xf32, #tpu.memory_space<vmem>>, vector<2x128xf32>
    tpu.vector_store %arg15[%c0_37, %c0_38], %65 {strides = array<i32>} : memref<2x128xf32, #tpu.memory_space<vmem>>, vector<2x128xf32>,
    return
  }
  func.func @transform_0(%arg0: i32) -> (i32, i32) {
    %c0_i32 = arith.constant 0 : i32
    %c0_i32_0 = arith.constant 0 : i32
    return %arg0, %c0_i32 : i32, i32
  }
  func.func @transform_1(%arg0: i32) -> (i32, i32) {
    %c0_i32 = arith.constant 0 : i32
    %c0_i32_0 = arith.constant 0 : i32
    return %arg0, %c0_i32 : i32, i32
  }
  func.func @transform_2(%arg0: i32) -> (i32, i32) {
    %c0_i32 = arith.constant 0 : i32
    %c0_i32_0 = arith.constant 0 : i32
    %c0_i32_1 = arith.constant 0 : i32
    return %c0_i32, %c0_i32_0 : i32, i32
  }
  func.func @transform_3(%arg0: i32) -> (i32, i32) {
    %c0_i32 = arith.constant 0 : i32
    %c0_i32_0 = arith.constant 0 : i32
    %c0_i32_1 = arith.constant 0 : i32
    return %c0_i32, %c0_i32_0 : i32, i32
  }
  func.func @transform_4(%arg0: i32) -> (i32, i32) {
    %c0_i32 = arith.constant 0 : i32
    %c0_i32_0 = arith.constant 0 : i32
    %c0_i32_1 = arith.constant 0 : i32
    return %c0_i32, %c0_i32_0 : i32, i32
  }
  func.func @transform_5(%arg0: i32) -> (i32, i32) {
    %c0_i32 = arith.constant 0 : i32
    %c0_i32_0 = arith.constant 0 : i32
    %c0_i32_1 = arith.constant 0 : i32
    return %c0_i32, %c0_i32_0 : i32, i32
  }
  func.func @transform_6(%arg0: i32) -> (i32, i32) {
    %c0_i32 = arith.constant 0 : i32
    %c0_i32_0 = arith.constant 0 : i32
    %c0_i32_1 = arith.constant 0 : i32
    return %c0_i32, %c0_i32_0 : i32, i32
  }
  func.func @transform_7(%arg0: i32) -> (i32, i32) {
    %c0_i32 = arith.constant 0 : i32
    %c0_i32_0 = arith.constant 0 : i32
    %c0_i32_1 = arith.constant 0 : i32
    return %c0_i32, %c0_i32_0 : i32, i32
  }
  func.func @transform_8(%arg0: i32) -> (i32, i32) {
    %c0_i32 = arith.constant 0 : i32
    %c0_i32_0 = arith.constant 0 : i32
    %c0_i32_1 = arith.constant 0 : i32
    return %c0_i32, %c0_i32_0 : i32, i32
  }
  func.func @transform_9(%arg0: i32) -> (i32, i32) {
    %c0_i32 = arith.constant 0 : i32
    %c0_i32_0 = arith.constant 0 : i32
    %c0_i32_1 = arith.constant 0 : i32
    return %c0_i32, %c0_i32_0 : i32, i32
  }
  func.func @transform_10(%arg0: i32) -> (i32, i32) {
    %c0_i32 = arith.constant 0 : i32
    %c0_i32_0 = arith.constant 0 : i32
    %c0_i32_1 = arith.constant 0 : i32
    return %c0_i32, %c0_i32_0 : i32, i32
  }
  func.func @transform_11(%arg0: i32) -> (i32, i32) {
    %c0_i32 = arith.constant 0 : i32
    %c0_i32_0 = arith.constant 0 : i32
    %c0_i32_1 = arith.constant 0 : i32
    return %c0_i32, %c0_i32_0 : i32, i32
  }
  func.func @transform_12(%arg0: i32) -> (i32, i32) {
    %c0_i32 = arith.constant 0 : i32
    %c0_i32_0 = arith.constant 0 : i32
    %c0_i32_1 = arith.constant 0 : i32
    return %c0_i32, %c0_i32_0 : i32, i32
  }
  func.func @transform_13(%arg0: i32) -> (i32, i32) {
    %c0_i32 = arith.constant 0 : i32
    %c0_i32_0 = arith.constant 0 : i32
    %c0_i32_1 = arith.constant 0 : i32
    return %c0_i32, %c0_i32_0 : i32, i32
  }
  func.func @transform_14(%arg0: i32) -> (i32, i32) {
    %c0_i32 = arith.constant 0 : i32
    %c0_i32_0 = arith.constant 0 : i32
    return %arg0, %c0_i32 : i32, i32
  }
}

</mosaic_0001>

<llo_original>
// kernel: tpu_custom_call.1
$region0: #{tpu_custom_call.1}
  #allocation0 [shape = 'u32[]', space=smem, size = 0x4, offset = 0x4, fixed_abs, tag = 'smem constant byte address 0x4 - core index']
  #allocation1 [shape = 'u32[144,128]{1,0:T(1,128)}', space=vmem, size = 0x12000, scoped, tag = 'internal scratch']
  #allocation2 [shape = 'f32[1,1]{1,0:T(1,128)S(1)}', space=vmem, size = 0x200, scoped, tag = 'scoped memory for tpu_custom_call.1']
  %s0 = inlined_call_operand.vmem [shape: f32[128,3], index: 0, kind: input, shape index: {}]
  %s1 = inlined_call_operand.vmem [shape: f32[2,128], index: 1, kind: input, shape index: {}]
  %s2 = inlined_call_operand.vmem [shape: f32[3,128], index: 2, kind: input, shape index: {}]
  %s3 = inlined_call_operand.vmem [shape: f32[1,128], index: 3, kind: input, shape index: {}]
  %s4 = inlined_call_operand.vmem [shape: f32[128,128], index: 4, kind: input, shape index: {}]
  %s5 = inlined_call_operand.vmem [shape: f32[1,128], index: 5, kind: input, shape index: {}]
  %s6 = inlined_call_operand.hbm [shape: f32[128,512], index: 6, kind: input, shape index: {}]
  %s7 = inlined_call_operand.vmem [shape: f32[1,512], index: 7, kind: input, shape index: {}]
  %s8 = inlined_call_operand.hbm [shape: f32[512,256], index: 8, kind: input, shape index: {}]
  %s9 = inlined_call_operand.vmem [shape: f32[1,256], index: 9, kind: input, shape index: {}]
  %s10 = inlined_call_operand.hbm [shape: f32[256,128], index: 10, kind: input, shape index: {}]
  %s11 = inlined_call_operand.vmem [shape: f32[1,128], index: 11, kind: input, shape index: {}]
  %s12 = inlined_call_operand.vmem [shape: f32[1,128], index: 12, kind: input, shape index: {}]
  %s13 = inlined_call_operand.<no memory space> [shape: f32[1,1], index: 13, kind: input, shape index: {}]
  %s14 = inlined_call_operand.hbm [shape: f32[2,128], index: 14, kind: output, shape index: {}]
  %s15 = sld [smem:[#allocation0]]
  $region78: #{tpu_custom_call.1} parent=0
    _
  %s17 = ssub.s32 1, %s15
  %s18 = scalar_select 0, %s17, %s15
  %v19 = vstv %s13
  %20 = vst [vmem:[#allocation2] sm:$0x1] %v19
  $region1: #{tpu_custom_call.1} parent=0
    #allocation3 [shape = 'u8[262144]{0}', space=vmem, size = 0x40000, scoped, tag = 'input window, operand 6, single buffered']
    #allocation4 [shape = 's32[1]{0}', space=sflag, size = 0x4, scoped, tag = 'scoped memory for tpu_custom_call.1']
    #allocation5 [shape = 's32[1]{0}', space=sflag, size = 0x4, scoped, tag = 'scoped memory for tpu_custom_call.1']
    #allocation6 [shape = 'u8[524288]{0}', space=vmem, size = 0x80000, scoped, tag = 'input window, operand 8, single buffered']
    #allocation7 [shape = 's32[1]{0}', space=sflag, size = 0x4, scoped, tag = 'scoped memory for tpu_custom_call.1']
    #allocation8 [shape = 'u8[131072]{0}', space=vmem, size = 0x20000, scoped, tag = 'input window, operand 10, single buffered']
    #allocation9 [shape = 'u8[1024]{0}', space=vmem, size = 0x400, scoped, tag = 'output window, operand 0, single buffered']
    %21 = vsyncpa [#allocation4], 0
    %22 = vsyncpa [#allocation7], 0
    %23 = vsyncpa [#allocation5], 0
    // Predicated region
    $region2: #{tpu_custom_call.1} parent=1 // pred_check
      _
    $region3: #{tpu_custom_call.1} parent=1 // pred_check_branch
      %25 = sbr.rel (0) target = $region5
    $region4: #{tpu_custom_call.1} parent=1 // pred_region
      _
    $region5: #{tpu_custom_call.1} parent=1 // pred_fallthru
      _
    // Predicated region
    $region6: #{tpu_custom_call.1} parent=1 // pred_check
      _
    $region7: #{tpu_custom_call.1} parent=1 // pred_check_branch
      %27 = sbr.rel (0) target = $region9
    $region8: #{tpu_custom_call.1} parent=1 // pred_region
      _
    $region9: #{tpu_custom_call.1} parent=1 // pred_fallthru
      _
    // Predicated region
    $region10: #{tpu_custom_call.1} parent=1 // pred_check
      _
    $region11: #{tpu_custom_call.1} parent=1 // pred_check_branch
      %29 = sbr.rel (0) target = $region13
    $region12: #{tpu_custom_call.1} parent=1 // pred_region
      _
    $region13: #{tpu_custom_call.1} parent=1 // pred_fallthru
      _
    // Predicated region
    $region14: #{tpu_custom_call.1} parent=1 // pred_check
      _
    $region15: #{tpu_custom_call.1} parent=1 // pred_check_branch
      %31 = sbr.rel (0) target = $region17
    $region16: #{tpu_custom_call.1} parent=1 // pred_region
      _
    $region17: #{tpu_custom_call.1} parent=1 // pred_fallthru
      _
    // Predicated region
    $region18: #{tpu_custom_call.1} parent=1 // pred_check
      _
    $region19: #{tpu_custom_call.1} parent=1 // pred_check_branch
      %33 = sbr.rel (0) target = $region21
    $region20: #{tpu_custom_call.1} parent=1 // pred_region
      _
    $region21: #{tpu_custom_call.1} parent=1 // pred_fallthru
      _
    // Predicated region
    $region22: #{tpu_custom_call.1} parent=1 // pred_check
      _
    $region23: #{tpu_custom_call.1} parent=1 // pred_check_branch
      %35 = sbr.rel (0) target = $region25
    $region24: #{tpu_custom_call.1} parent=1 // pred_region
      _
    $region25: #{tpu_custom_call.1} parent=1 // pred_fallthru
      _
    // Predicated region
    $region26: #{tpu_custom_call.1} parent=1 // pred_check
      _
    $region27: #{tpu_custom_call.1} parent=1 // pred_check_branch
      %37 = sbr.rel (0) target = $region29
    $region28: #{tpu_custom_call.1} parent=1 // pred_region
      %s39 = ssub.s32 8192, 8192
      %40 = vsyncadd [#allocation4], %s39
      %s41 = sshll.u32 [#allocation3], 4
      %s42 = int_to_ptr.vmem [resolvable:$true] %s41
      %47 = dma.hbm_to_vmem [thread:$0]  %s6, 8192, %s42, [#allocation4], 512, 512, 32
    $region29: #{tpu_custom_call.1} parent=1 // pred_fallthru
      _
    // Predicated region
    $region30: #{tpu_custom_call.1} parent=1 // pred_check
      _
    $region31: #{tpu_custom_call.1} parent=1 // pred_check_branch
      %49 = sbr.rel (0) target = $region33
    $region32: #{tpu_custom_call.1} parent=1 // pred_region
      _
    $region33: #{tpu_custom_call.1} parent=1 // pred_fallthru
      _
    // Predicated region
    $region34: #{tpu_custom_call.1} parent=1 // pred_check
      _
    $region35: #{tpu_custom_call.1} parent=1 // pred_check_branch
      %51 = sbr.rel (0) target = $region37
    $region36: #{tpu_custom_call.1} parent=1 // pred_region
      %s53 = ssub.s32 16384, 16384
      %54 = vsyncadd [#allocation7], %s53
      %s55 = sshll.u32 [#allocation6], 4
      %s56 = int_to_ptr.vmem [resolvable:$true] %s55
      %61 = dma.hbm_to_vmem [thread:$0]  %s8, 16384, %s56, [#allocation7], 256, 256, 16
    $region37: #{tpu_custom_call.1} parent=1 // pred_fallthru
      _
    // Predicated region
    $region38: #{tpu_custom_call.1} parent=1 // pred_check
      _
    $region39: #{tpu_custom_call.1} parent=1 // pred_check_branch
      %63 = sbr.rel (0) target = $region41
    $region40: #{tpu_custom_call.1} parent=1 // pred_region
      _
    $region41: #{tpu_custom_call.1} parent=1 // pred_fallthru
      _
    // Predicated region
    $region42: #{tpu_custom_call.1} parent=1 // pred_check
      _
    $region43: #{tpu_custom_call.1} parent=1 // pred_check_branch
      %65 = sbr.rel (0) target = $region45
    $region44: #{tpu_custom_call.1} parent=1 // pred_region
      %s67 = ssub.s32 4096, 4096
      %68 = vsyncadd [#allocation7], %s67
      %s69 = sshll.u32 [#allocation8], 4
      %s70 = int_to_ptr.vmem [resolvable:$true] %s69
      %75 = dma.hbm_to_vmem [thread:$0]  %s10, 4096, %s70, [#allocation7], 128, 128, 8
    $region45: #{tpu_custom_call.1} parent=1 // pred_fallthru
      _
    // Predicated region
    $region46: #{tpu_custom_call.1} parent=1 // pred_check
      _
    $region47: #{tpu_custom_call.1} parent=1 // pred_check_branch
      %77 = sbr.rel (0) target = $region49
    $region48: #{tpu_custom_call.1} parent=1 // pred_region
      _
    $region49: #{tpu_custom_call.1} parent=1 // pred_fallthru
      _
    // Predicated region
    $region50: #{tpu_custom_call.1} parent=1 // pred_check
      _
    $region51: #{tpu_custom_call.1} parent=1 // pred_check_branch
      %79 = sbr.rel (0) target = $region53
    $region52: #{tpu_custom_call.1} parent=1 // pred_region
      _
    $region53: #{tpu_custom_call.1} parent=1 // pred_fallthru
      _
    // Predicated region
    $region54: #{tpu_custom_call.1} parent=1 // pred_check
      _
    $region55: #{tpu_custom_call.1} parent=1 // pred_check_branch
      %81 = sbr.rel (0) target = $region57
    $region56: #{tpu_custom_call.1} parent=1 // pred_region
      _
    $region57: #{tpu_custom_call.1} parent=1 // pred_fallthru
      _
    // Predicated region
    $region58: #{tpu_custom_call.1} parent=1 // pred_check
      _
    $region59: #{tpu_custom_call.1} parent=1 // pred_check_branch
      %83 = sbr.rel (0) target = $region61
    $region60: #{tpu_custom_call.1} parent=1 // pred_region
      %84 = dma.done [#allocation4], 8192
    $region61: #{tpu_custom_call.1} parent=1 // pred_fallthru
      _
    // Predicated region
    $region62: #{tpu_custom_call.1} parent=1 // pred_check
      _
    $region63: #{tpu_custom_call.1} parent=1 // pred_check_branch
      %86 = sbr.rel (0) target = $region65
    $region64: #{tpu_custom_call.1} parent=1 // pred_region
      %87 = dma.done [#allocation7], 16384
    $region65: #{tpu_custom_call.1} parent=1 // pred_fallthru
      _
    // Predicated region
    $region66: #{tpu_custom_call.1} parent=1 // pred_check
      _
    $region67: #{tpu_custom_call.1} parent=1 // pred_check_branch
      %89 = sbr.rel (0) target = $region69
    $region68: #{tpu_custom_call.1} parent=1 // pred_region
      %90 = dma.done [#allocation7], 4096
    $region69: #{tpu_custom_call.1} parent=1 // pred_fallthru
      _
    %v91 = vld [vmem:[%s0] sm:$0xff]
    %v92 = vld [vmem:[%s0 + $0x8] sm:$0xff]
    %v93 = vld [vmem:[%s0 + $0x10] sm:$0xff]
    %v94 = vld [vmem:[%s0 + $0x18] sm:$0xff]
    %v95 = vld [vmem:[%s0 + $0x20] sm:$0xff]
    %v96 = vld [vmem:[%s0 + $0x28] sm:$0xff]
    %v97 = vld [vmem:[%s0 + $0x30] sm:$0xff]
    %v98 = vld [vmem:[%s0 + $0x38] sm:$0xff]
    %v99 = vld [vmem:[%s0 + $0x40] sm:$0xff]
    %v100 = vld [vmem:[%s0 + $0x48] sm:$0xff]
    %v101 = vld [vmem:[%s0 + $0x50] sm:$0xff]
    %v102 = vld [vmem:[%s0 + $0x58] sm:$0xff]
    %v103 = vld [vmem:[%s0 + $0x60] sm:$0xff]
    %v104 = vld [vmem:[%s0 + $0x68] sm:$0xff]
    %v105 = vld [vmem:[%s0 + $0x70] sm:$0xff]
    %v106 = vld [vmem:[%s0 + $0x78] sm:$0xff]
    %v107 = vld [vmem:[%s2] sm:$0x7]
    %109 = vset.pattern.permute.xlu0 0
    %110 = vperm.xlu0 %109, %v91
    %v111 = vpop.permute.xlu0 %110
    %114 = vset.pattern.permute.xlu0 0
    %115 = vperm.xlu0 %114, %v92
    %v116 = vpop.permute.xlu0 %115
    %119 = vset.pattern.permute.xlu0 0
    %120 = vperm.xlu0 %119, %v93
    %v121 = vpop.permute.xlu0 %120
    %124 = vset.pattern.permute.xlu0 0
    %125 = vperm.xlu0 %124, %v94
    %v126 = vpop.permute.xlu0 %125
    %129 = vset.pattern.permute.xlu0 0
    %130 = vperm.xlu0 %129, %v95
    %v131 = vpop.permute.xlu0 %130
    %134 = vset.pattern.permute.xlu0 0
    %135 = vperm.xlu0 %134, %v96
    %v136 = vpop.permute.xlu0 %135
    %139 = vset.pattern.permute.xlu0 0
    %140 = vperm.xlu0 %139, %v97
    %v141 = vpop.permute.xlu0 %140
    %144 = vset.pattern.permute.xlu0 0
    %145 = vperm.xlu0 %144, %v98
    %v146 = vpop.permute.xlu0 %145
    %149 = vset.pattern.permute.xlu0 0
    %150 = vperm.xlu0 %149, %v99
    %v151 = vpop.permute.xlu0 %150
    %154 = vset.pattern.permute.xlu0 0
    %155 = vperm.xlu0 %154, %v100
    %v156 = vpop.permute.xlu0 %155
    %159 = vset.pattern.permute.xlu0 0
    %160 = vperm.xlu0 %159, %v101
    %v161 = vpop.permute.xlu0 %160
    %164 = vset.pattern.permute.xlu0 0
    %165 = vperm.xlu0 %164, %v102
    %v166 = vpop.permute.xlu0 %165
    %169 = vset.pattern.permute.xlu0 0
    %170 = vperm.xlu0 %169, %v103
    %v171 = vpop.permute.xlu0 %170
    %174 = vset.pattern.permute.xlu0 0
    %175 = vperm.xlu0 %174, %v104
    %v176 = vpop.permute.xlu0 %175
    %179 = vset.pattern.permute.xlu0 0
    %180 = vperm.xlu0 %179, %v105
    %v181 = vpop.permute.xlu0 %180
    %184 = vset.pattern.permute.xlu0 0
    %185 = vperm.xlu0 %184, %v106
    %v186 = vpop.permute.xlu0 %185
    %v188 = vlaneseq
    %v189 = vshrl.u32 %v188, 7
    %v190 = vsub.s32 0, %v189
    %v191 = vrot.slane %v107, %v190
    %v192 = vmul.f32 %v111, %v191
    %v193 = vmul.f32 %v116, %v191
    %v194 = vmul.f32 %v121, %v191
    %v195 = vmul.f32 %v126, %v191
    %v196 = vmul.f32 %v131, %v191
    %v197 = vmul.f32 %v136, %v191
    %v198 = vmul.f32 %v141, %v191
    %v199 = vmul.f32 %v146, %v191
    %v200 = vmul.f32 %v151, %v191
    %v201 = vmul.f32 %v156, %v191
    %v202 = vmul.f32 %v161, %v191
    %v203 = vmul.f32 %v166, %v191
    %v204 = vmul.f32 %v171, %v191
    %v205 = vmul.f32 %v176, %v191
    %v206 = vmul.f32 %v181, %v191
    %v207 = vmul.f32 %v186, %v191
    %v208 = vld [vmem:[%s3] sm:$0x1]
    %v210 = vlaneseq
    %v211 = vshrl.u32 %v210, 7
    %v212 = vsub.s32 0, %v211
    %v213 = vrot.slane %v208, %v212
    %v215 = vadd.f32 %v192, %v213
    %v216 = vadd.f32 %v193, %v213
    %v217 = vadd.f32 %v194, %v213
    %v218 = vadd.f32 %v195, %v213
    %v219 = vadd.f32 %v196, %v213
    %v220 = vadd.f32 %v197, %v213
    %v221 = vadd.f32 %v198, %v213
    %v222 = vadd.f32 %v199, %v213
    %v223 = vadd.f32 %v200, %v213
    %v224 = vadd.f32 %v201, %v213
    %v225 = vadd.f32 %v202, %v213
    %v226 = vadd.f32 %v203, %v213
    %v227 = vadd.f32 %v204, %v213
    %v228 = vadd.f32 %v205, %v213
    %v229 = vadd.f32 %v206, %v213
    %v230 = vadd.f32 %v207, %v213
    %231 = vset.pattern.permute.xlu0 1
    %232 = vperm.xlu0 %231, %v91
    %v233 = vpop.permute.xlu0 %232
    %235 = vset.pattern.permute.xlu0 1
    %236 = vperm.xlu0 %235, %v92
    %v237 = vpop.permute.xlu0 %236
    %239 = vset.pattern.permute.xlu0 1
    %240 = vperm.xlu0 %239, %v93
    %v241 = vpop.permute.xlu0 %240
    %243 = vset.pattern.permute.xlu0 1
    %244 = vperm.xlu0 %243, %v94
    %v245 = vpop.permute.xlu0 %244
    %247 = vset.pattern.permute.xlu0 1
    %248 = vperm.xlu0 %247, %v95
    %v249 = vpop.permute.xlu0 %248
    %251 = vset.pattern.permute.xlu0 1
    %252 = vperm.xlu0 %251, %v96
    %v253 = vpop.permute.xlu0 %252
    %255 = vset.pattern.permute.xlu0 1
    %256 = vperm.xlu0 %255, %v97
    %v257 = vpop.permute.xlu0 %256
    %259 = vset.pattern.permute.xlu0 1
    %260 = vperm.xlu0 %259, %v98
    %v261 = vpop.permute.xlu0 %260
    %263 = vset.pattern.permute.xlu0 1
    %264 = vperm.xlu0 %263, %v99
    %v265 = vpop.permute.xlu0 %264
    %267 = vset.pattern.permute.xlu0 1
    %268 = vperm.xlu0 %267, %v100
    %v269 = vpop.permute.xlu0 %268
    %271 = vset.pattern.permute.xlu0 1
    %272 = vperm.xlu0 %271, %v101
    %v273 = vpop.permute.xlu0 %272
    %275 = vset.pattern.permute.xlu0 1
    %276 = vperm.xlu0 %275, %v102
    %v277 = vpop.permute.xlu0 %276
    %279 = vset.pattern.permute.xlu0 1
    %280 = vperm.xlu0 %279, %v103
    %v281 = vpop.permute.xlu0 %280
    %283 = vset.pattern.permute.xlu0 1
    %284 = vperm.xlu0 %283, %v104
    %v285 = vpop.permute.xlu0 %284
    %287 = vset.pattern.permute.xlu0 1
    %288 = vperm.xlu0 %287, %v105
    %v289 = vpop.permute.xlu0 %288
    %291 = vset.pattern.permute.xlu0 1
    %292 = vperm.xlu0 %291, %v106
    %v293 = vpop.permute.xlu0 %292
    %v295 = vlaneseq
    %v296 = vshrl.u32 %v295, 7
    %v297 = vsub.s32 1, %v296
    %v298 = vrot.slane %v107, %v297
    %v299 = vmul.f32 %v233, %v298
    %v300 = vmul.f32 %v237, %v298
    %v301 = vmul.f32 %v241, %v298
    %v302 = vmul.f32 %v245, %v298
    %v303 = vmul.f32 %v249, %v298
    %v304 = vmul.f32 %v253, %v298
    %v305 = vmul.f32 %v257, %v298
    %v306 = vmul.f32 %v261, %v298
    %v307 = vmul.f32 %v265, %v298
    %v308 = vmul.f32 %v269, %v298
    %v309 = vmul.f32 %v273, %v298
    %v310 = vmul.f32 %v277, %v298
    %v311 = vmul.f32 %v281, %v298
    %v312 = vmul.f32 %v285, %v298
    %v313 = vmul.f32 %v289, %v298
    %v314 = vmul.f32 %v293, %v298
    %v315 = vadd.f32 %v215, %v299
    %v316 = vadd.f32 %v216, %v300
    %v317 = vadd.f32 %v217, %v301
    %v318 = vadd.f32 %v218, %v302
    %v319 = vadd.f32 %v219, %v303
    %v320 = vadd.f32 %v220, %v304
    %v321 = vadd.f32 %v221, %v305
    %v322 = vadd.f32 %v222, %v306
    %v323 = vadd.f32 %v223, %v307
    %v324 = vadd.f32 %v224, %v308
    %v325 = vadd.f32 %v225, %v309
    %v326 = vadd.f32 %v226, %v310
    %v327 = vadd.f32 %v227, %v311
    %v328 = vadd.f32 %v228, %v312
    %v329 = vadd.f32 %v229, %v313
    %v330 = vadd.f32 %v230, %v314
    %331 = vset.pattern.permute.xlu0 2
    %332 = vperm.xlu0 %331, %v91
    %v333 = vpop.permute.xlu0 %332
    %335 = vset.pattern.permute.xlu0 2
    %336 = vperm.xlu0 %335, %v92
    %v337 = vpop.permute.xlu0 %336
    %339 = vset.pattern.permute.xlu0 2
    %340 = vperm.xlu0 %339, %v93
    %v341 = vpop.permute.xlu0 %340
    %343 = vset.pattern.permute.xlu0 2
    %344 = vperm.xlu0 %343, %v94
    %v345 = vpop.permute.xlu0 %344
    %347 = vset.pattern.permute.xlu0 2
    %348 = vperm.xlu0 %347, %v95
    %v349 = vpop.permute.xlu0 %348
    %351 = vset.pattern.permute.xlu0 2
    %352 = vperm.xlu0 %351, %v96
    %v353 = vpop.permute.xlu0 %352
    %355 = vset.pattern.permute.xlu0 2
    %356 = vperm.xlu0 %355, %v97
    %v357 = vpop.permute.xlu0 %356
    %359 = vset.pattern.permute.xlu0 2
    %360 = vperm.xlu0 %359, %v98
    %v361 = vpop.permute.xlu0 %360
    %363 = vset.pattern.permute.xlu0 2
    %364 = vperm.xlu0 %363, %v99
    %v365 = vpop.permute.xlu0 %364
    %367 = vset.pattern.permute.xlu0 2
    %368 = vperm.xlu0 %367, %v100
    %v369 = vpop.permute.xlu0 %368
    %371 = vset.pattern.permute.xlu0 2
    %372 = vperm.xlu0 %371, %v101
    %v373 = vpop.permute.xlu0 %372
    %375 = vset.pattern.permute.xlu0 2
    %376 = vperm.xlu0 %375, %v102
    %v377 = vpop.permute.xlu0 %376
    %379 = vset.pattern.permute.xlu0 2
    %380 = vperm.xlu0 %379, %v103
    %v381 = vpop.permute.xlu0 %380
    %383 = vset.pattern.permute.xlu0 2
    %384 = vperm.xlu0 %383, %v104
    %v385 = vpop.permute.xlu0 %384
    %387 = vset.pattern.permute.xlu0 2
    %388 = vperm.xlu0 %387, %v105
    %v389 = vpop.permute.xlu0 %388
    %391 = vset.pattern.permute.xlu0 2
    %392 = vperm.xlu0 %391, %v106
    %v393 = vpop.permute.xlu0 %392
    %v395 = vlaneseq
    %v396 = vshrl.u32 %v395, 7
    %v397 = vsub.s32 2, %v396
    %v398 = vrot.slane %v107, %v397
    %v399 = vmul.f32 %v333, %v398
    %v400 = vmul.f32 %v337, %v398
    %v401 = vmul.f32 %v341, %v398
    %v402 = vmul.f32 %v345, %v398
    %v403 = vmul.f32 %v349, %v398
    %v404 = vmul.f32 %v353, %v398
    %v405 = vmul.f32 %v357, %v398
    %v406 = vmul.f32 %v361, %v398
    %v407 = vmul.f32 %v365, %v398
    %v408 = vmul.f32 %v369, %v398
    %v409 = vmul.f32 %v373, %v398
    %v410 = vmul.f32 %v377, %v398
    %v411 = vmul.f32 %v381, %v398
    %v412 = vmul.f32 %v385, %v398
    %v413 = vmul.f32 %v389, %v398
    %v414 = vmul.f32 %v393, %v398
    %v415 = vadd.f32 %v315, %v399
    %v416 = vadd.f32 %v316, %v400
    %v417 = vadd.f32 %v317, %v401
    %v418 = vadd.f32 %v318, %v402
    %v419 = vadd.f32 %v319, %v403
    %v420 = vadd.f32 %v320, %v404
    %v421 = vadd.f32 %v321, %v405
    %v422 = vadd.f32 %v322, %v406
    %v423 = vadd.f32 %v323, %v407
    %v424 = vadd.f32 %v324, %v408
    %v425 = vadd.f32 %v325, %v409
    %v426 = vadd.f32 %v326, %v410
    %v427 = vadd.f32 %v327, %v411
    %v428 = vadd.f32 %v328, %v412
    %v429 = vadd.f32 %v329, %v413
    %v430 = vadd.f32 %v330, %v414
    %v431 = vmax.f32 %v415, 0.0
    %v432 = vmax.f32 %v416, 0.0
    %v433 = vmax.f32 %v417, 0.0
    %v434 = vmax.f32 %v418, 0.0
    %v435 = vmax.f32 %v419, 0.0
    %v436 = vmax.f32 %v420, 0.0
    %v437 = vmax.f32 %v421, 0.0
    %v438 = vmax.f32 %v422, 0.0
    %v439 = vmax.f32 %v423, 0.0
    %v440 = vmax.f32 %v424, 0.0
    %v441 = vmax.f32 %v425, 0.0
    %v442 = vmax.f32 %v426, 0.0
    %v443 = vmax.f32 %v427, 0.0
    %v444 = vmax.f32 %v428, 0.0
    %v445 = vmax.f32 %v429, 0.0
    %v446 = vmax.f32 %v430, 0.0
    %v447 = vld [vmem:[%s4] sm:$0xff]
    %v448 = vld [vmem:[%s4 + $0x8] sm:$0xff]
    %v449 = vld [vmem:[%s4 + $0x10] sm:$0xff]
    %v450 = vld [vmem:[%s4 + $0x18] sm:$0xff]
    %v451 = vld [vmem:[%s4 + $0x20] sm:$0xff]
    %v452 = vld [vmem:[%s4 + $0x28] sm:$0xff]
    %v453 = vld [vmem:[%s4 + $0x30] sm:$0xff]
    %v454 = vld [vmem:[%s4 + $0x38] sm:$0xff]
    %v455 = vld [vmem:[%s4 + $0x40] sm:$0xff]
    %v456 = vld [vmem:[%s4 + $0x48] sm:$0xff]
    %v457 = vld [vmem:[%s4 + $0x50] sm:$0xff]
    %v458 = vld [vmem:[%s4 + $0x58] sm:$0xff]
    %v459 = vld [vmem:[%s4 + $0x60] sm:$0xff]
    %v460 = vld [vmem:[%s4 + $0x68] sm:$0xff]
    %v461 = vld [vmem:[%s4 + $0x70] sm:$0xff]
    %v462 = vld [vmem:[%s4 + $0x78] sm:$0xff]
    %v463 = vld [vmem:[%s5] sm:$0x1]
    %v465 = vlaneseq
    %v466 = vshrl.u32 %v465, 7
    %v467 = vsub.s32 0, %v466
    %v468 = vrot.slane %v463, %v467
    %470 = vmatprep.subr.mxu0 0.0
    %471 = vmatpush1.msra.mxu0 %v462
    %472 = vmatprep.subr.mxu0 0.0
    %473 = vmatpush1.msra.mxu0 %v461
    %474 = vmatprep.subr.mxu0 0.0
    %475 = vmatpush1.msra.mxu0 %v460
    %476 = vmatprep.subr.mxu0 0.0
    %477 = vmatpush1.msra.mxu0 %v459
    %478 = vmatprep.subr.mxu0 0.0
    %479 = vmatpush1.msra.mxu0 %v458
    %480 = vmatprep.subr.mxu0 0.0
    %481 = vmatpush1.msra.mxu0 %v457
    %482 = vmatprep.subr.mxu0 0.0
    %483 = vmatpush1.msra.mxu0 %v456
    %484 = vmatprep.subr.mxu0 0.0
    %485 = vmatpush1.msra.mxu0 %v455
    %486 = vmatprep.subr.mxu0 0.0
    %487 = vmatpush1.msra.mxu0 %v454
    %488 = vmatprep.subr.mxu0 0.0
    %489 = vmatpush1.msra.mxu0 %v453
    %490 = vmatprep.subr.mxu0 0.0
    %491 = vmatpush1.msra.mxu0 %v452
    %492 = vmatprep.subr.mxu0 0.0
    %493 = vmatpush1.msra.mxu0 %v451
    %494 = vmatprep.subr.mxu0 0.0
    %495 = vmatpush1.msra.mxu0 %v450
    %496 = vmatprep.subr.mxu0 0.0
    %497 = vmatpush1.msra.mxu0 %v449
    %498 = vmatprep.subr.mxu0 0.0
    %499 = vmatpush1.msra.mxu0 %v448
    %500 = vmatprep.subr.mxu0 0.0
    %501 = vmatpush1.msra.mxu0 %v447
    %502 = vmatprep.subr.mxu0 0.0
    %503 = vmatpush2.msra.mxu0 0.0
    %504 = vmatprep.subr.mxu0 0.0
    %505 = vmatpush2.msra.mxu0 0.0
    %506 = vmatprep.subr.mxu0 0.0
    %507 = vmatpush2.msra.mxu0 0.0
    %508 = vmatprep.subr.mxu0 0.0
    %509 = vmatpush2.msra.mxu0 0.0
    %510 = vmatprep.subr.mxu0 0.0
    %511 = vmatpush2.msra.mxu0 0.0
    %512 = vmatprep.subr.mxu0 0.0
    %513 = vmatpush2.msra.mxu0 0.0
    %514 = vmatprep.subr.mxu0 0.0
    %515 = vmatpush2.msra.mxu0 0.0
    %516 = vmatprep.subr.mxu0 0.0
    %517 = vmatpush2.msra.mxu0 0.0
    %518 = vmatprep.subr.mxu0 0.0
    %519 = vmatpush2.msra.mxu0 0.0
    %520 = vmatprep.subr.mxu0 0.0
    %521 = vmatpush2.msra.mxu0 0.0
    %522 = vmatprep.subr.mxu0 0.0
    %523 = vmatpush2.msra.mxu0 0.0
    %524 = vmatprep.subr.mxu0 0.0
    %525 = vmatpush2.msra.mxu0 0.0
    %526 = vmatprep.subr.mxu0 0.0
    %527 = vmatpush2.msra.mxu0 0.0
    %528 = vmatprep.subr.mxu0 0.0
    %529 = vmatpush2.msra.mxu0 0.0
    %530 = vmatprep.subr.mxu0 0.0
    %531 = vmatpush2.msra.mxu0 0.0
    %532 = vmatprep.subr.mxu0 0.0
    %533 = vmatpush2.msra.mxu0 0.0
    %534 = vmatprep.mubr.f32.mxu0 0.0
    %535 = vmatmul.mubr.f32.gmra.mxu0 %v431
    %v536 = vpop.f32.mrf.mxu0
    %v537 = vadd.f32 %v468, %v536
    %v538 = vpop.f32.mrf.mxu0
    %539 = vmatprep.mubr.f32.mxu0 0.0
    %540 = vmatmul.mubr.f32.gmra.mxu0 %v432
    %v541 = vpop.f32.mrf.mxu0
    %v542 = vadd.f32 %v468, %v541
    %v543 = vpop.f32.mrf.mxu0
    %544 = vmatprep.mubr.f32.mxu0 0.0
    %545 = vmatmul.mubr.f32.gmra.mxu0 %v433
    %v546 = vpop.f32.mrf.mxu0
    %v547 = vadd.f32 %v468, %v546
    %v548 = vpop.f32.mrf.mxu0
    %549 = vmatprep.mubr.f32.mxu0 0.0
    %550 = vmatmul.mubr.f32.gmra.mxu0 %v434
    %v551 = vpop.f32.mrf.mxu0
    %v552 = vadd.f32 %v468, %v551
    %v553 = vpop.f32.mrf.mxu0
    %554 = vmatprep.mubr.f32.mxu0 0.0
    %555 = vmatmul.mubr.f32.gmra.mxu0 %v435
    %v556 = vpop.f32.mrf.mxu0
    %v557 = vadd.f32 %v468, %v556
    %v558 = vpop.f32.mrf.mxu0
    %559 = vmatprep.mubr.f32.mxu0 0.0
    %560 = vmatmul.mubr.f32.gmra.mxu0 %v436
    %v561 = vpop.f32.mrf.mxu0
    %v562 = vadd.f32 %v468, %v561
    %v563 = vpop.f32.mrf.mxu0
    %564 = vmatprep.mubr.f32.mxu0 0.0
    %565 = vmatmul.mubr.f32.gmra.mxu0 %v437
    %v566 = vpop.f32.mrf.mxu0
    %v567 = vadd.f32 %v468, %v566
    %v568 = vpop.f32.mrf.mxu0
    %569 = vmatprep.mubr.f32.mxu0 0.0
    %570 = vmatmul.mubr.f32.gmra.mxu0 %v438
    %v571 = vpop.f32.mrf.mxu0
    %v572 = vadd.f32 %v468, %v571
    %v573 = vpop.f32.mrf.mxu0
    %574 = vmatprep.mubr.f32.mxu0 0.0
    %575 = vmatmul.mubr.f32.gmra.mxu0 %v439
    %v576 = vpop.f32.mrf.mxu0
    %v577 = vadd.f32 %v468, %v576
    %v578 = vpop.f32.mrf.mxu0
    %579 = vmatprep.mubr.f32.mxu0 0.0
    %580 = vmatmul.mubr.f32.gmra.mxu0 %v440
    %v581 = vpop.f32.mrf.mxu0
    %v582 = vadd.f32 %v468, %v581
    %v583 = vpop.f32.mrf.mxu0
    %584 = vmatprep.mubr.f32.mxu0 0.0
    %585 = vmatmul.mubr.f32.gmra.mxu0 %v441
    %v586 = vpop.f32.mrf.mxu0
    %v587 = vadd.f32 %v468, %v586
    %v588 = vpop.f32.mrf.mxu0
    %589 = vmatprep.mubr.f32.mxu0 0.0
    %590 = vmatmul.mubr.f32.gmra.mxu0 %v442
    %v591 = vpop.f32.mrf.mxu0
    %v592 = vadd.f32 %v468, %v591
    %v593 = vpop.f32.mrf.mxu0
    %594 = vmatprep.mubr.f32.mxu0 0.0
    %595 = vmatmul.mubr.f32.gmra.mxu0 %v443
    %v596 = vpop.f32.mrf.mxu0
    %v597 = vadd.f32 %v468, %v596
    %v598 = vpop.f32.mrf.mxu0
    %599 = vmatprep.mubr.f32.mxu0 0.0
    %600 = vmatmul.mubr.f32.gmra.mxu0 %v444
    %v601 = vpop.f32.mrf.mxu0
    %v602 = vadd.f32 %v468, %v601
    %v603 = vpop.f32.mrf.mxu0
    %604 = vmatprep.mubr.f32.mxu0 0.0
    %605 = vmatmul.mubr.f32.gmra.mxu0 %v445
    %v606 = vpop.f32.mrf.mxu0
    %v607 = vadd.f32 %v468, %v606
    %v608 = vpop.f32.mrf.mxu0
    %609 = vmatprep.mubr.f32.mxu0 0.0
    %610 = vmatmul.mubr.f32.gmra.mxu0 %v446
    %v611 = vpop.f32.mrf.mxu0
    %v612 = vadd.f32 %v468, %v611
    %v613 = vpop.f32.mrf.mxu0
    %614 = vdwg.mxu0
    %v615 = vmax.f32 %v537, 0.0
    %v616 = vmax.f32 %v542, 0.0
    %v617 = vmax.f32 %v547, 0.0
    %v618 = vmax.f32 %v552, 0.0
    %v619 = vmax.f32 %v557, 0.0
    %v620 = vmax.f32 %v562, 0.0
    %v621 = vmax.f32 %v567, 0.0
    %v622 = vmax.f32 %v572, 0.0
    %v623 = vmax.f32 %v577, 0.0
    %v624 = vmax.f32 %v582, 0.0
    %v625 = vmax.f32 %v587, 0.0
    %v626 = vmax.f32 %v592, 0.0
    %v627 = vmax.f32 %v597, 0.0
    %v628 = vmax.f32 %v602, 0.0
    %v629 = vmax.f32 %v607, 0.0
    %v630 = vmax.f32 %v612, 0.0
    %v631 = vmax.f32 %v615, %v617
    %v632 = vmax.f32 %v616, %v618
    %v633 = vmax.f32 %v631, %v619
    %v634 = vmax.f32 %v632, %v620
    %v635 = vmax.f32 %v633, %v621
    %v636 = vmax.f32 %v634, %v622
    %v637 = vmax.f32 %v635, %v636
    %v638 = vrot.slane %v637, 4
    %v639 = vmax.f32 %v637, %v638
    %v640 = vrot.slane %v639, 2
    %v641 = vmax.f32 %v639, %v640
    %v642 = vrot.slane %v641, 1
    %v643 = vmax.f32 %v641, %v642
    %v644 = vmax.f32 %v623, %v625
    %v645 = vmax.f32 %v624, %v626
    %v646 = vmax.f32 %v644, %v627
    %v647 = vmax.f32 %v645, %v628
    %v648 = vmax.f32 %v646, %v629
    %v649 = vmax.f32 %v647, %v630
    %v650 = vmax.f32 %v648, %v649
    %v651 = vrot.slane %v650, 4
    %v652 = vmax.f32 %v650, %v651
    %v653 = vrot.slane %v652, 2
    %v654 = vmax.f32 %v652, %v653
    %v655 = vrot.slane %v654, 1
    %v656 = vmax.f32 %v654, %v655
    %v657 = vld [vmem:[%s1] sm:$0x3]
    %v659 = vrot.slane %v657, 1
    %v662 = vadd.f32 %v643, %v657
    %v663 = vadd.f32 %v656, %v659
    %v664 = vld [vmem:[#allocation3] sm:$0xff]
    %v665 = vld [vmem:[#allocation3 + $0x8] sm:$0xff]
    %v666 = vld [vmem:[#allocation3 + $0x10] sm:$0xff]
    %v667 = vld [vmem:[#allocation3 + $0x18] sm:$0xff]
    %v668 = vld [vmem:[#allocation3 + $0x20] sm:$0xff]
    %v669 = vld [vmem:[#allocation3 + $0x28] sm:$0xff]
    %v670 = vld [vmem:[#allocation3 + $0x30] sm:$0xff]
    %v671 = vld [vmem:[#allocation3 + $0x38] sm:$0xff]
    %v672 = vld [vmem:[#allocation3 + $0x40] sm:$0xff]
    %v673 = vld [vmem:[#allocation3 + $0x48] sm:$0xff]
    %v674 = vld [vmem:[#allocation3 + $0x50] sm:$0xff]
    %v675 = vld [vmem:[#allocation3 + $0x58] sm:$0xff]
    %v676 = vld [vmem:[#allocation3 + $0x60] sm:$0xff]
    %v677 = vld [vmem:[#allocation3 + $0x68] sm:$0xff]
    %v678 = vld [vmem:[#allocation3 + $0x70] sm:$0xff]
    %v679 = vld [vmem:[#allocation3 + $0x78] sm:$0xff]
    %v680 = vld [vmem:[#allocation3 + $0x80] sm:$0xff]
    %v681 = vld [vmem:[#allocation3 + $0x88] sm:$0xff]
    %v682 = vld [vmem:[#allocation3 + $0x90] sm:$0xff]
    %v683 = vld [vmem:[#allocation3 + $0x98] sm:$0xff]
    %v684 = vld [vmem:[#allocation3 + $0xa0] sm:$0xff]
    %v685 = vld [vmem:[#allocation3 + $0xa8] sm:$0xff]
    %v686 = vld [vmem:[#allocation3 + $0xb0] sm:$0xff]
    %v687 = vld [vmem:[#allocation3 + $0xb8] sm:$0xff]
    %v688 = vld [vmem:[#allocation3 + $0xc0] sm:$0xff]
    %v689 = vld [vmem:[#allocation3 + $0xc8] sm:$0xff]
    %v690 = vld [vmem:[#allocation3 + $0xd0] sm:$0xff]
    %v691 = vld [vmem:[#allocation3 + $0xd8] sm:$0xff]
    %v692 = vld [vmem:[#allocation3 + $0xe0] sm:$0xff]
    %v693 = vld [vmem:[#allocation3 + $0xe8] sm:$0xff]
    %v694 = vld [vmem:[#allocation3 + $0xf0] sm:$0xff]
    %v695 = vld [vmem:[#allocation3 + $0xf8] sm:$0xff]
    %v696 = vld [vmem:[#allocation3 + $0x100] sm:$0xff]
    %v697 = vld [vmem:[#allocation3 + $0x108] sm:$0xff]
    %v698 = vld [vmem:[#allocation3 + $0x110] sm:$0xff]
    %v699 = vld [vmem:[#allocation3 + $0x118] sm:$0xff]
    %v700 = vld [vmem:[#allocation3 + $0x120] sm:$0xff]
    %v701 = vld [vmem:[#allocation3 + $0x128] sm:$0xff]
    %v702 = vld [vmem:[#allocation3 + $0x130] sm:$0xff]
    %v703 = vld [vmem:[#allocation3 + $0x138] sm:$0xff]
    %v704 = vld [vmem:[#allocation3 + $0x140] sm:$0xff]
    %v705 = vld [vmem:[#allocation3 + $0x148] sm:$0xff]
    %v706 = vld [vmem:[#allocation3 + $0x150] sm:$0xff]
    %v707 = vld [vmem:[#allocation3 + $0x158] sm:$0xff]
    %v708 = vld [vmem:[#allocation3 + $0x160] sm:$0xff]
    %v709 = vld [vmem:[#allocation3 + $0x168] sm:$0xff]
    %v710 = vld [vmem:[#allocation3 + $0x170] sm:$0xff]
    %v711 = vld [vmem:[#allocation3 + $0x178] sm:$0xff]
    %v712 = vld [vmem:[#allocation3 + $0x180] sm:$0xff]
    %v713 = vld [vmem:[#allocation3 + $0x188] sm:$0xff]
    %v714 = vld [vmem:[#allocation3 + $0x190] sm:$0xff]
    %v715 = vld [vmem:[#allocation3 + $0x198] sm:$0xff]
    %v716 = vld [vmem:[#allocation3 + $0x1a0] sm:$0xff]
    %v717 = vld [vmem:[#allocation3 + $0x1a8] sm:$0xff]
    %v718 = vld [vmem:[#allocation3 + $0x1b0] sm:$0xff]
    %v719 = vld [vmem:[#allocation3 + $0x1b8] sm:$0xff]
    %v720 = vld [vmem:[#allocation3 + $0x1c0] sm:$0xff]
    %v721 = vld [vmem:[#allocation3 + $0x1c8] sm:$0xff]
    %v722 = vld [vmem:[#allocation3 + $0x1d0] sm:$0xff]
    %v723 = vld [vmem:[#allocation3 + $0x1d8] sm:$0xff]
    %v724 = vld [vmem:[#allocation3 + $0x1e0] sm:$0xff]
    %v725 = vld [vmem:[#allocation3 + $0x1e8] sm:$0xff]
    %v726 = vld [vmem:[#allocation3 + $0x1f0] sm:$0xff]
    %v727 = vld [vmem:[#allocation3 + $0x1f8] sm:$0xff]
    %v728 = vld [vmem:[%s7] sm:$0xf]
    %v730 = vlaneseq
    %v731 = vshrl.u32 %v730, 7
    %v732 = vsub.s32 0, %v731
    %v733 = vrot.slane %v728, %v732
    %v734 = vlaneseq
    %v735 = vshrl.u32 %v734, 7
    %v736 = vsub.s32 1, %v735
    %v737 = vrot.slane %v728, %v736
    %v738 = vlaneseq
    %v739 = vshrl.u32 %v738, 7
    %v740 = vsub.s32 2, %v739
    %v741 = vrot.slane %v728, %v740
    %v742 = vlaneseq
    %v743 = vshrl.u32 %v742, 7
    %v744 = vsub.s32 3, %v743
    %v745 = vrot.slane %v728, %v744
    %v752 = vrot.slane %v663, 7
    %vm753 = vcmask 1041409
    %v754 = vsel %vm753, %v752, %v662
    %756 = vmatprep.subr.mxu0 %v725
    %757 = vmatpush1.msra.mxu0 %v724
    %758 = vmatprep.subr.mxu0 %v721
    %759 = vmatpush1.msra.mxu0 %v720
    %760 = vmatprep.subr.mxu0 %v717
    %761 = vmatpush1.msra.mxu0 %v716
    %762 = vmatprep.subr.mxu0 %v713
    %763 = vmatpush1.msra.mxu0 %v712
    %764 = vmatprep.subr.mxu0 %v709
    %765 = vmatpush1.msra.mxu0 %v708
    %766 = vmatprep.subr.mxu0 %v705
    %767 = vmatpush1.msra.mxu0 %v704
    %768 = vmatprep.subr.mxu0 %v701
    %769 = vmatpush1.msra.mxu0 %v700
    %770 = vmatprep.subr.mxu0 %v697
    %771 = vmatpush1.msra.mxu0 %v696
    %772 = vmatprep.subr.mxu0 %v693
    %773 = vmatpush1.msra.mxu0 %v692
    %774 = vmatprep.subr.mxu0 %v689
    %775 = vmatpush1.msra.mxu0 %v688
    %776 = vmatprep.subr.mxu0 %v685
    %777 = vmatpush1.msra.mxu0 %v684
    %778 = vmatprep.subr.mxu0 %v681
    %779 = vmatpush1.msra.mxu0 %v680
    %780 = vmatprep.subr.mxu0 %v677
    %781 = vmatpush1.msra.mxu0 %v676
    %782 = vmatprep.subr.mxu0 %v673
    %783 = vmatpush1.msra.mxu0 %v672
    %784 = vmatprep.subr.mxu0 %v669
    %785 = vmatpush1.msra.mxu0 %v668
    %786 = vmatprep.subr.mxu0 %v665
    %787 = vmatpush1.msra.mxu0 %v664
    %788 = vmatprep.subr.mxu0 0.0
    %789 = vmatpush2.msra.mxu0 0.0
    %790 = vmatprep.subr.mxu0 0.0
    %791 = vmatpush2.msra.mxu0 0.0
    %792 = vmatprep.subr.mxu0 0.0
    %793 = vmatpush2.msra.mxu0 0.0
    %794 = vmatprep.subr.mxu0 0.0
    %795 = vmatpush2.msra.mxu0 0.0
    %796 = vmatprep.subr.mxu0 0.0
    %797 = vmatpush2.msra.mxu0 0.0
    %798 = vmatprep.subr.mxu0 0.0
    %799 = vmatpush2.msra.mxu0 0.0
    %800 = vmatprep.subr.mxu0 0.0
    %801 = vmatpush2.msra.mxu0 0.0
    %802 = vmatprep.subr.mxu0 0.0
    %803 = vmatpush2.msra.mxu0 0.0
    %804 = vmatprep.subr.mxu0 0.0
    %805 = vmatpush2.msra.mxu0 0.0
    %806 = vmatprep.subr.mxu0 0.0
    %807 = vmatpush2.msra.mxu0 0.0
    %808 = vmatprep.subr.mxu0 0.0
    %809 = vmatpush2.msra.mxu0 0.0
    %810 = vmatprep.subr.mxu0 0.0
    %811 = vmatpush2.msra.mxu0 0.0
    %812 = vmatprep.subr.mxu0 0.0
    %813 = vmatpush2.msra.mxu0 0.0
    %814 = vmatprep.subr.mxu0 0.0
    %815 = vmatpush2.msra.mxu0 0.0
    %816 = vmatprep.subr.mxu0 0.0
    %817 = vmatpush2.msra.mxu0 0.0
    %818 = vmatprep.subr.mxu0 0.0
    %819 = vmatpush2.msra.mxu0 0.0
    %820 = vmatprep.mubr.f32.mxu0 0.0
    %821 = vmatmul.mubr.f32.gmra.mxu0 %v754
    %v822 = vpop.f32.mrf.mxu0
    %v823 = vadd.f32 %v733, %v822
    %v824 = vpop.f32.mrf.mxu0
    %v825 = vadd.f32 %v737, %v824
    %826 = vdwg.mxu0
    %827 = vmatprep.subr.mxu0 %v727
    %828 = vmatpush1.msra.mxu0 %v726
    %829 = vmatprep.subr.mxu0 %v723
    %830 = vmatpush1.msra.mxu0 %v722
    %831 = vmatprep.subr.mxu0 %v719
    %832 = vmatpush1.msra.mxu0 %v718
    %833 = vmatprep.subr.mxu0 %v715
    %834 = vmatpush1.msra.mxu0 %v714
    %835 = vmatprep.subr.mxu0 %v711
    %836 = vmatpush1.msra.mxu0 %v710
    %837 = vmatprep.subr.mxu0 %v707
    %838 = vmatpush1.msra.mxu0 %v706
    %839 = vmatprep.subr.mxu0 %v703
    %840 = vmatpush1.msra.mxu0 %v702
    %841 = vmatprep.subr.mxu0 %v699
    %842 = vmatpush1.msra.mxu0 %v698
    %843 = vmatprep.subr.mxu0 %v695
    %844 = vmatpush1.msra.mxu0 %v694
    %845 = vmatprep.subr.mxu0 %v691
    %846 = vmatpush1.msra.mxu0 %v690
    %847 = vmatprep.subr.mxu0 %v687
    %848 = vmatpush1.msra.mxu0 %v686
    %849 = vmatprep.subr.mxu0 %v683
    %850 = vmatpush1.msra.mxu0 %v682
    %851 = vmatprep.subr.mxu0 %v679
    %852 = vmatpush1.msra.mxu0 %v678
    %853 = vmatprep.subr.mxu0 %v675
    %854 = vmatpush1.msra.mxu0 %v674
    %855 = vmatprep.subr.mxu0 %v671
    %856 = vmatpush1.msra.mxu0 %v670
    %857 = vmatprep.subr.mxu0 %v667
    %858 = vmatpush1.msra.mxu0 %v666
    %859 = vmatprep.subr.mxu0 0.0
    %860 = vmatpush2.msra.mxu0 0.0
    %861 = vmatprep.subr.mxu0 0.0
    %862 = vmatpush2.msra.mxu0 0.0
    %863 = vmatprep.subr.mxu0 0.0
    %864 = vmatpush2.msra.mxu0 0.0
    %865 = vmatprep.subr.mxu0 0.0
    %866 = vmatpush2.msra.mxu0 0.0
    %867 = vmatprep.subr.mxu0 0.0
    %868 = vmatpush2.msra.mxu0 0.0
    %869 = vmatprep.subr.mxu0 0.0
    %870 = vmatpush2.msra.mxu0 0.0
    %871 = vmatprep.subr.mxu0 0.0
    %872 = vmatpush2.msra.mxu0 0.0
    %873 = vmatprep.subr.mxu0 0.0
    %874 = vmatpush2.msra.mxu0 0.0
    %875 = vmatprep.subr.mxu0 0.0
    %876 = vmatpush2.msra.mxu0 0.0
    %877 = vmatprep.subr.mxu0 0.0
    %878 = vmatpush2.msra.mxu0 0.0
    %879 = vmatprep.subr.mxu0 0.0
    %880 = vmatpush2.msra.mxu0 0.0
    %881 = vmatprep.subr.mxu0 0.0
    %882 = vmatpush2.msra.mxu0 0.0
    %883 = vmatprep.subr.mxu0 0.0
    %884 = vmatpush2.msra.mxu0 0.0
    %885 = vmatprep.subr.mxu0 0.0
    %886 = vmatpush2.msra.mxu0 0.0
    %887 = vmatprep.subr.mxu0 0.0
    %888 = vmatpush2.msra.mxu0 0.0
    %889 = vmatprep.subr.mxu0 0.0
    %890 = vmatpush2.msra.mxu0 0.0
    %891 = vmatprep.mubr.f32.mxu0 0.0
    %892 = vmatmul.mubr.f32.gmra.mxu0 %v754
    %v893 = vpop.f32.mrf.mxu0
    %v894 = vadd.f32 %v741, %v893
    %v895 = vpop.f32.mrf.mxu0
    %v896 = vadd.f32 %v745, %v895
    %897 = vdwg.mxu0
    %v898 = vmax.f32 %v823, 0.0
    %v899 = vmax.f32 %v825, 0.0
    %v900 = vmax.f32 %v894, 0.0
    %v901 = vmax.f32 %v896, 0.0
    %v902 = vld [vmem:[#allocation6] sm:$0xff]
    %v903 = vld [vmem:[#allocation6 + $0x8] sm:$0xff]
    %v904 = vld [vmem:[#allocation6 + $0x10] sm:$0xff]
    %v905 = vld [vmem:[#allocation6 + $0x18] sm:$0xff]
    %v906 = vld [vmem:[#allocation6 + $0x20] sm:$0xff]
    %v907 = vld [vmem:[#allocation6 + $0x28] sm:$0xff]
    %v908 = vld [vmem:[#allocation6 + $0x30] sm:$0xff]
    %v909 = vld [vmem:[#allocation6 + $0x38] sm:$0xff]
    %v910 = vld [vmem:[#allocation6 + $0x40] sm:$0xff]
    %v911 = vld [vmem:[#allocation6 + $0x48] sm:$0xff]
    %v912 = vld [vmem:[#allocation6 + $0x50] sm:$0xff]
    %v913 = vld [vmem:[#allocation6 + $0x58] sm:$0xff]
    %v914 = vld [vmem:[#allocation6 + $0x60] sm:$0xff]
    %v915 = vld [vmem:[#allocation6 + $0x68] sm:$0xff]
    %v916 = vld [vmem:[#allocation6 + $0x70] sm:$0xff]
    %v917 = vld [vmem:[#allocation6 + $0x78] sm:$0xff]
    %v918 = vld [vmem:[#allocation6 + $0x80] sm:$0xff]
    %v919 = vld [vmem:[#allocation6 + $0x88] sm:$0xff]
    %v920 = vld [vmem:[#allocation6 + $0x90] sm:$0xff]
    %v921 = vld [vmem:[#allocation6 + $0x98] sm:$0xff]
    %v922 = vld [vmem:[#allocation6 + $0xa0] sm:$0xff]
    %v923 = vld [vmem:[#allocation6 + $0xa8] sm:$0xff]
    %v924 = vld [vmem:[#allocation6 + $0xb0] sm:$0xff]
    %v925 = vld [vmem:[#allocation6 + $0xb8] sm:$0xff]
    %v926 = vld [vmem:[#allocation6 + $0xc0] sm:$0xff]
    %v927 = vld [vmem:[#allocation6 + $0xc8] sm:$0xff]
    %v928 = vld [vmem:[#allocation6 + $0xd0] sm:$0xff]
    %v929 = vld [vmem:[#allocation6 + $0xd8] sm:$0xff]
    %v930 = vld [vmem:[#allocation6 + $0xe0] sm:$0xff]
    %v931 = vld [vmem:[#allocation6 + $0xe8] sm:$0xff]
    %v932 = vld [vmem:[#allocation6 + $0xf0] sm:$0xff]
    %v933 = vld [vmem:[#allocation6 + $0xf8] sm:$0xff]
    %v934 = vld [vmem:[#allocation6 + $0x100] sm:$0xff]
    %v935 = vld [vmem:[#allocation6 + $0x108] sm:$0xff]
    %v936 = vld [vmem:[#allocation6 + $0x110] sm:$0xff]
    %v937 = vld [vmem:[#allocation6 + $0x118] sm:$0xff]
    %v938 = vld [vmem:[#allocation6 + $0x120] sm:$0xff]
    %v939 = vld [vmem:[#allocation6 + $0x128] sm:$0xff]
    %v940 = vld [vmem:[#allocation6 + $0x130] sm:$0xff]
    %v941 = vld [vmem:[#allocation6 + $0x138] sm:$0xff]
    %v942 = vld [vmem:[#allocation6 + $0x140] sm:$0xff]
    %v943 = vld [vmem:[#allocation6 + $0x148] sm:$0xff]
    %v944 = vld [vmem:[#allocation6 + $0x150] sm:$0xff]
    %v945 = vld [vmem:[#allocation6 + $0x158] sm:$0xff]
    %v946 = vld [vmem:[#allocation6 + $0x160] sm:$0xff]
    %v947 = vld [vmem:[#allocation6 + $0x168] sm:$0xff]
    %v948 = vld [vmem:[#allocation6 + $0x170] sm:$0xff]
    %v949 = vld [vmem:[#allocation6 + $0x178] sm:$0xff]
    %v950 = vld [vmem:[#allocation6 + $0x180] sm:$0xff]
    %v951 = vld [vmem:[#allocation6 + $0x188] sm:$0xff]
    %v952 = vld [vmem:[#allocation6 + $0x190] sm:$0xff]
    %v953 = vld [vmem:[#allocation6 + $0x198] sm:$0xff]
    %v954 = vld [vmem:[#allocation6 + $0x1a0] sm:$0xff]
    %v955 = vld [vmem:[#allocation6 + $0x1a8] sm:$0xff]
    %v956 = vld [vmem:[#allocation6 + $0x1b0] sm:$0xff]
    %v957 = vld [vmem:[#allocation6 + $0x1b8] sm:$0xff]
    %v958 = vld [vmem:[#allocation6 + $0x1c0] sm:$0xff]
    %v959 = vld [vmem:[#allocation6 + $0x1c8] sm:$0xff]
    %v960 = vld [vmem:[#allocation6 + $0x1d0] sm:$0xff]
    %v961 = vld [vmem:[#allocation6 + $0x1d8] sm:$0xff]
    %v962 = vld [vmem:[#allocation6 + $0x1e0] sm:$0xff]
    %v963 = vld [vmem:[#allocation6 + $0x1e8] sm:$0xff]
    %v964 = vld [vmem:[#allocation6 + $0x1f0] sm:$0xff]
    %v965 = vld [vmem:[#allocation6 + $0x1f8] sm:$0xff]
    %v966 = vld [vmem:[#allocation6 + $0x200] sm:$0xff]
    %v967 = vld [vmem:[#allocation6 + $0x208] sm:$0xff]
    %v968 = vld [vmem:[#allocation6 + $0x210] sm:$0xff]
    %v969 = vld [vmem:[#allocation6 + $0x218] sm:$0xff]
    %v970 = vld [vmem:[#allocation6 + $0x220] sm:$0xff]
    %v971 = vld [vmem:[#allocation6 + $0x228] sm:$0xff]
    %v972 = vld [vmem:[#allocation6 + $0x230] sm:$0xff]
    %v973 = vld [vmem:[#allocation6 + $0x238] sm:$0xff]
    %v974 = vld [vmem:[#allocation6 + $0x240] sm:$0xff]
    %v975 = vld [vmem:[#allocation6 + $0x248] sm:$0xff]
    %v976 = vld [vmem:[#allocation6 + $0x250] sm:$0xff]
    %v977 = vld [vmem:[#allocation6 + $0x258] sm:$0xff]
    %v978 = vld [vmem:[#allocation6 + $0x260] sm:$0xff]
    %v979 = vld [vmem:[#allocation6 + $0x268] sm:$0xff]
    %v980 = vld [vmem:[#allocation6 + $0x270] sm:$0xff]
    %v981 = vld [vmem:[#allocation6 + $0x278] sm:$0xff]
    %v982 = vld [vmem:[#allocation6 + $0x280] sm:$0xff]
    %v983 = vld [vmem:[#allocation6 + $0x288] sm:$0xff]
    %v984 = vld [vmem:[#allocation6 + $0x290] sm:$0xff]
    %v985 = vld [vmem:[#allocation6 + $0x298] sm:$0xff]
    %v986 = vld [vmem:[#allocation6 + $0x2a0] sm:$0xff]
    %v987 = vld [vmem:[#allocation6 + $0x2a8] sm:$0xff]
    %v988 = vld [vmem:[#allocation6 + $0x2b0] sm:$0xff]
    %v989 = vld [vmem:[#allocation6 + $0x2b8] sm:$0xff]
    %v990 = vld [vmem:[#allocation6 + $0x2c0] sm:$0xff]
    %v991 = vld [vmem:[#allocation6 + $0x2c8] sm:$0xff]
    %v992 = vld [vmem:[#allocation6 + $0x2d0] sm:$0xff]
    %v993 = vld [vmem:[#allocation6 + $0x2d8] sm:$0xff]
    %v994 = vld [vmem:[#allocation6 + $0x2e0] sm:$0xff]
    %v995 = vld [vmem:[#allocation6 + $0x2e8] sm:$0xff]
    %v996 = vld [vmem:[#allocation6 + $0x2f0] sm:$0xff]
    %v997 = vld [vmem:[#allocation6 + $0x2f8] sm:$0xff]
    %v998 = vld [vmem:[#allocation6 + $0x300] sm:$0xff]
    %v999 = vld [vmem:[#allocation6 + $0x308] sm:$0xff]
    %v1000 = vld [vmem:[#allocation6 + $0x310] sm:$0xff]
    %v1001 = vld [vmem:[#allocation6 + $0x318] sm:$0xff]
    %v1002 = vld [vmem:[#allocation6 + $0x320] sm:$0xff]
    %v1003 = vld [vmem:[#allocation6 + $0x328] sm:$0xff]
    %v1004 = vld [vmem:[#allocation6 + $0x330] sm:$0xff]
    %v1005 = vld [vmem:[#allocation6 + $0x338] sm:$0xff]
    %v1006 = vld [vmem:[#allocation6 + $0x340] sm:$0xff]
    %v1007 = vld [vmem:[#allocation6 + $0x348] sm:$0xff]
    %v1008 = vld [vmem:[#allocation6 + $0x350] sm:$0xff]
    %v1009 = vld [vmem:[#allocation6 + $0x358] sm:$0xff]
    %v1010 = vld [vmem:[#allocation6 + $0x360] sm:$0xff]
    %v1011 = vld [vmem:[#allocation6 + $0x368] sm:$0xff]
    %v1012 = vld [vmem:[#allocation6 + $0x370] sm:$0xff]
    %v1013 = vld [vmem:[#allocation6 + $0x378] sm:$0xff]
    %v1014 = vld [vmem:[#allocation6 + $0x380] sm:$0xff]
    %v1015 = vld [vmem:[#allocation6 + $0x388] sm:$0xff]
    %v1016 = vld [vmem:[#allocation6 + $0x390] sm:$0xff]
    %v1017 = vld [vmem:[#allocation6 + $0x398] sm:$0xff]
    %v1018 = vld [vmem:[#allocation6 + $0x3a0] sm:$0xff]
    %v1019 = vld [vmem:[#allocation6 + $0x3a8] sm:$0xff]
    %v1020 = vld [vmem:[#allocation6 + $0x3b0] sm:$0xff]
    %v1021 = vld [vmem:[#allocation6 + $0x3b8] sm:$0xff]
    %v1022 = vld [vmem:[#allocation6 + $0x3c0] sm:$0xff]
    %v1023 = vld [vmem:[#allocation6 + $0x3c8] sm:$0xff]
    %v1024 = vld [vmem:[#allocation6 + $0x3d0] sm:$0xff]
    %v1025 = vld [vmem:[#allocation6 + $0x3d8] sm:$0xff]
    %v1026 = vld [vmem:[#allocation6 + $0x3e0] sm:$0xff]
    %v1027 = vld [vmem:[#allocation6 + $0x3e8] sm:$0xff]
    %v1028 = vld [vmem:[#allocation6 + $0x3f0] sm:$0xff]
    %v1029 = vld [vmem:[#allocation6 + $0x3f8] sm:$0xff]
    %v1030 = vld [vmem:[%s9] sm:$0x3]
    %v1032 = vlaneseq
    %v1033 = vshrl.u32 %v1032, 7
    %v1034 = vsub.s32 0, %v1033
    %v1035 = vrot.slane %v1030, %v1034
    %v1036 = vlaneseq
    %v1037 = vshrl.u32 %v1036, 7
    %v1038 = vsub.s32 1, %v1037
    %v1039 = vrot.slane %v1030, %v1038
    %1042 = vmatprep.subr.mxu0 %v933
    %1043 = vmatpush1.msra.mxu0 %v932
    %1044 = vmatprep.subr.mxu0 %v931
    %1045 = vmatpush1.msra.mxu0 %v930
    %1046 = vmatprep.subr.mxu0 %v929
    %1047 = vmatpush1.msra.mxu0 %v928
    %1048 = vmatprep.subr.mxu0 %v927
    %1049 = vmatpush1.msra.mxu0 %v926
    %1050 = vmatprep.subr.mxu0 %v925
    %1051 = vmatpush1.msra.mxu0 %v924
    %1052 = vmatprep.subr.mxu0 %v923
    %1053 = vmatpush1.msra.mxu0 %v922
    %1054 = vmatprep.subr.mxu0 %v921
    %1055 = vmatpush1.msra.mxu0 %v920
    %1056 = vmatprep.subr.mxu0 %v919
    %1057 = vmatpush1.msra.mxu0 %v918
    %1058 = vmatprep.subr.mxu0 %v917
    %1059 = vmatpush1.msra.mxu0 %v916
    %1060 = vmatprep.subr.mxu0 %v915
    %1061 = vmatpush1.msra.mxu0 %v914
    %1062 = vmatprep.subr.mxu0 %v913
    %1063 = vmatpush1.msra.mxu0 %v912
    %1064 = vmatprep.subr.mxu0 %v911
    %1065 = vmatpush1.msra.mxu0 %v910
    %1066 = vmatprep.subr.mxu0 %v909
    %1067 = vmatpush1.msra.mxu0 %v908
    %1068 = vmatprep.subr.mxu0 %v907
    %1069 = vmatpush1.msra.mxu0 %v906
    %1070 = vmatprep.subr.mxu0 %v905
    %1071 = vmatpush1.msra.mxu0 %v904
    %1072 = vmatprep.subr.mxu0 %v903
    %1073 = vmatpush1.msra.mxu0 %v902
    %1074 = vmatprep.subr.mxu0 %v965
    %1075 = vmatpush2.msra.mxu0 %v964
    %1076 = vmatprep.subr.mxu0 %v963
    %1077 = vmatpush2.msra.mxu0 %v962
    %1078 = vmatprep.subr.mxu0 %v961
    %1079 = vmatpush2.msra.mxu0 %v960
    %1080 = vmatprep.subr.mxu0 %v959
    %1081 = vmatpush2.msra.mxu0 %v958
    %1082 = vmatprep.subr.mxu0 %v957
    %1083 = vmatpush2.msra.mxu0 %v956
    %1084 = vmatprep.subr.mxu0 %v955
    %1085 = vmatpush2.msra.mxu0 %v954
    %1086 = vmatprep.subr.mxu0 %v953
    %1087 = vmatpush2.msra.mxu0 %v952
    %1088 = vmatprep.subr.mxu0 %v951
    %1089 = vmatpush2.msra.mxu0 %v950
    %1090 = vmatprep.subr.mxu0 %v949
    %1091 = vmatpush2.msra.mxu0 %v948
    %1092 = vmatprep.subr.mxu0 %v947
    %1093 = vmatpush2.msra.mxu0 %v946
    %1094 = vmatprep.subr.mxu0 %v945
    %1095 = vmatpush2.msra.mxu0 %v944
    %1096 = vmatprep.subr.mxu0 %v943
    %1097 = vmatpush2.msra.mxu0 %v942
    %1098 = vmatprep.subr.mxu0 %v941
    %1099 = vmatpush2.msra.mxu0 %v940
    %1100 = vmatprep.subr.mxu0 %v939
    %1101 = vmatpush2.msra.mxu0 %v938
    %1102 = vmatprep.subr.mxu0 %v937
    %1103 = vmatpush2.msra.mxu0 %v936
    %1104 = vmatprep.subr.mxu0 %v935
    %1105 = vmatpush2.msra.mxu0 %v934
    %1106 = vmatprep.mubr.f32.mxu0 %v899
    %1107 = vmatmul.mubr.f32.gmra.mxu0 %v898
    %v1108 = vpop.f32.mrf.mxu0
    %v1109 = vadd.f32 %v1035, %v1108
    %v1110 = vpop.f32.mrf.mxu0
    %v1111 = vadd.f32 %v1039, %v1110
    %1112 = vdwg.mxu0
    %1113 = vmatprep.subr.mxu0 %v997
    %1114 = vmatpush1.msra.mxu0 %v996
    %1115 = vmatprep.subr.mxu0 %v995
    %1116 = vmatpush1.msra.mxu0 %v994
    %1117 = vmatprep.subr.mxu0 %v993
    %1118 = vmatpush1.msra.mxu0 %v992
    %1119 = vmatprep.subr.mxu0 %v991
    %1120 = vmatpush1.msra.mxu0 %v990
    %1121 = vmatprep.subr.mxu0 %v989
    %1122 = vmatpush1.msra.mxu0 %v988
    %1123 = vmatprep.subr.mxu0 %v987
    %1124 = vmatpush1.msra.mxu0 %v986
    %1125 = vmatprep.subr.mxu0 %v985
    %1126 = vmatpush1.msra.mxu0 %v984
    %1127 = vmatprep.subr.mxu0 %v983
    %1128 = vmatpush1.msra.mxu0 %v982
    %1129 = vmatprep.subr.mxu0 %v981
    %1130 = vmatpush1.msra.mxu0 %v980
    %1131 = vmatprep.subr.mxu0 %v979
    %1132 = vmatpush1.msra.mxu0 %v978
    %1133 = vmatprep.subr.mxu0 %v977
    %1134 = vmatpush1.msra.mxu0 %v976
    %1135 = vmatprep.subr.mxu0 %v975
    %1136 = vmatpush1.msra.mxu0 %v974
    %1137 = vmatprep.subr.mxu0 %v973
    %1138 = vmatpush1.msra.mxu0 %v972
    %1139 = vmatprep.subr.mxu0 %v971
    %1140 = vmatpush1.msra.mxu0 %v970
    %1141 = vmatprep.subr.mxu0 %v969
    %1142 = vmatpush1.msra.mxu0 %v968
    %1143 = vmatprep.subr.mxu0 %v967
    %1144 = vmatpush1.msra.mxu0 %v966
    %1145 = vmatprep.subr.mxu0 %v1029
    %1146 = vmatpush2.msra.mxu0 %v1028
    %1147 = vmatprep.subr.mxu0 %v1027
    %1148 = vmatpush2.msra.mxu0 %v1026
    %1149 = vmatprep.subr.mxu0 %v1025
    %1150 = vmatpush2.msra.mxu0 %v1024
    %1151 = vmatprep.subr.mxu0 %v1023
    %1152 = vmatpush2.msra.mxu0 %v1022
    %1153 = vmatprep.subr.mxu0 %v1021
    %1154 = vmatpush2.msra.mxu0 %v1020
    %1155 = vmatprep.subr.mxu0 %v1019
    %1156 = vmatpush2.msra.mxu0 %v1018
    %1157 = vmatprep.subr.mxu0 %v1017
    %1158 = vmatpush2.msra.mxu0 %v1016
    %1159 = vmatprep.subr.mxu0 %v1015
    %1160 = vmatpush2.msra.mxu0 %v1014
    %1161 = vmatprep.subr.mxu0 %v1013
    %1162 = vmatpush2.msra.mxu0 %v1012
    %1163 = vmatprep.subr.mxu0 %v1011
    %1164 = vmatpush2.msra.mxu0 %v1010
    %1165 = vmatprep.subr.mxu0 %v1009
    %1166 = vmatpush2.msra.mxu0 %v1008
    %1167 = vmatprep.subr.mxu0 %v1007
    %1168 = vmatpush2.msra.mxu0 %v1006
    %1169 = vmatprep.subr.mxu0 %v1005
    %1170 = vmatpush2.msra.mxu0 %v1004
    %1171 = vmatprep.subr.mxu0 %v1003
    %1172 = vmatpush2.msra.mxu0 %v1002
    %1173 = vmatprep.subr.mxu0 %v1001
    %1174 = vmatpush2.msra.mxu0 %v1000
    %1175 = vmatprep.subr.mxu0 %v999
    %1176 = vmatpush2.msra.mxu0 %v998
    %1177 = vmatprep.mubr.f32.mxu0 %v901
    %1178 = vmatmul.mubr.f32.gmra.mxu0 %v900
    %v1179 = vpop.f32.mrf.mxu0
    %v1180 = vadd.f32 %v1109, %v1179
    %v1181 = vpop.f32.mrf.mxu0
    %v1182 = vadd.f32 %v1111, %v1181
    %1183 = vdwg.mxu0
    %v1184 = vmax.f32 %v1180, 0.0
    %v1185 = vmax.f32 %v1182, 0.0
    %v1186 = vld [vmem:[#allocation8] sm:$0xff]
    %v1187 = vld [vmem:[#allocation8 + $0x8] sm:$0xff]
    %v1188 = vld [vmem:[#allocation8 + $0x10] sm:$0xff]
    %v1189 = vld [vmem:[#allocation8 + $0x18] sm:$0xff]
    %v1190 = vld [vmem:[#allocation8 + $0x20] sm:$0xff]
    %v1191 = vld [vmem:[#allocation8 + $0x28] sm:$0xff]
    %v1192 = vld [vmem:[#allocation8 + $0x30] sm:$0xff]
    %v1193 = vld [vmem:[#allocation8 + $0x38] sm:$0xff]
    %v1194 = vld [vmem:[#allocation8 + $0x40] sm:$0xff]
    %v1195 = vld [vmem:[#allocation8 + $0x48] sm:$0xff]
    %v1196 = vld [vmem:[#allocation8 + $0x50] sm:$0xff]
    %v1197 = vld [vmem:[#allocation8 + $0x58] sm:$0xff]
    %v1198 = vld [vmem:[#allocation8 + $0x60] sm:$0xff]
    %v1199 = vld [vmem:[#allocation8 + $0x68] sm:$0xff]
    %v1200 = vld [vmem:[#allocation8 + $0x70] sm:$0xff]
    %v1201 = vld [vmem:[#allocation8 + $0x78] sm:$0xff]
    %v1202 = vld [vmem:[#allocation8 + $0x80] sm:$0xff]
    %v1203 = vld [vmem:[#allocation8 + $0x88] sm:$0xff]
    %v1204 = vld [vmem:[#allocation8 + $0x90] sm:$0xff]
    %v1205 = vld [vmem:[#allocation8 + $0x98] sm:$0xff]
    %v1206 = vld [vmem:[#allocation8 + $0xa0] sm:$0xff]
    %v1207 = vld [vmem:[#allocation8 + $0xa8] sm:$0xff]
    %v1208 = vld [vmem:[#allocation8 + $0xb0] sm:$0xff]
    %v1209 = vld [vmem:[#allocation8 + $0xb8] sm:$0xff]
    %v1210 = vld [vmem:[#allocation8 + $0xc0] sm:$0xff]
    %v1211 = vld [vmem:[#allocation8 + $0xc8] sm:$0xff]
    %v1212 = vld [vmem:[#allocation8 + $0xd0] sm:$0xff]
    %v1213 = vld [vmem:[#allocation8 + $0xd8] sm:$0xff]
    %v1214 = vld [vmem:[#allocation8 + $0xe0] sm:$0xff]
    %v1215 = vld [vmem:[#allocation8 + $0xe8] sm:$0xff]
    %v1216 = vld [vmem:[#allocation8 + $0xf0] sm:$0xff]
    %v1217 = vld [vmem:[#allocation8 + $0xf8] sm:$0xff]
    %v1218 = vld [vmem:[%s11] sm:$0x1]
    %v1220 = vlaneseq
    %v1221 = vshrl.u32 %v1220, 7
    %v1222 = vsub.s32 0, %v1221
    %v1223 = vrot.slane %v1218, %v1222
    %1225 = vmatprep.subr.mxu0 0.0
    %1226 = vmatpush1.msra.mxu0 %v1201
    %1227 = vmatprep.subr.mxu0 0.0
    %1228 = vmatpush1.msra.mxu0 %v1200
    %1229 = vmatprep.subr.mxu0 0.0
    %1230 = vmatpush1.msra.mxu0 %v1199
    %1231 = vmatprep.subr.mxu0 0.0
    %1232 = vmatpush1.msra.mxu0 %v1198
    %1233 = vmatprep.subr.mxu0 0.0
    %1234 = vmatpush1.msra.mxu0 %v1197
    %1235 = vmatprep.subr.mxu0 0.0
    %1236 = vmatpush1.msra.mxu0 %v1196
    %1237 = vmatprep.subr.mxu0 0.0
    %1238 = vmatpush1.msra.mxu0 %v1195
    %1239 = vmatprep.subr.mxu0 0.0
    %1240 = vmatpush1.msra.mxu0 %v1194
    %1241 = vmatprep.subr.mxu0 0.0
    %1242 = vmatpush1.msra.mxu0 %v1193
    %1243 = vmatprep.subr.mxu0 0.0
    %1244 = vmatpush1.msra.mxu0 %v1192
    %1245 = vmatprep.subr.mxu0 0.0
    %1246 = vmatpush1.msra.mxu0 %v1191
    %1247 = vmatprep.subr.mxu0 0.0
    %1248 = vmatpush1.msra.mxu0 %v1190
    %1249 = vmatprep.subr.mxu0 0.0
    %1250 = vmatpush1.msra.mxu0 %v1189
    %1251 = vmatprep.subr.mxu0 0.0
    %1252 = vmatpush1.msra.mxu0 %v1188
    %1253 = vmatprep.subr.mxu0 0.0
    %1254 = vmatpush1.msra.mxu0 %v1187
    %1255 = vmatprep.subr.mxu0 0.0
    %1256 = vmatpush1.msra.mxu0 %v1186
    %1257 = vmatprep.subr.mxu0 0.0
    %1258 = vmatpush2.msra.mxu0 %v1217
    %1259 = vmatprep.subr.mxu0 0.0
    %1260 = vmatpush2.msra.mxu0 %v1216
    %1261 = vmatprep.subr.mxu0 0.0
    %1262 = vmatpush2.msra.mxu0 %v1215
    %1263 = vmatprep.subr.mxu0 0.0
    %1264 = vmatpush2.msra.mxu0 %v1214
    %1265 = vmatprep.subr.mxu0 0.0
    %1266 = vmatpush2.msra.mxu0 %v1213
    %1267 = vmatprep.subr.mxu0 0.0
    %1268 = vmatpush2.msra.mxu0 %v1212
    %1269 = vmatprep.subr.mxu0 0.0
    %1270 = vmatpush2.msra.mxu0 %v1211
    %1271 = vmatprep.subr.mxu0 0.0
    %1272 = vmatpush2.msra.mxu0 %v1210
    %1273 = vmatprep.subr.mxu0 0.0
    %1274 = vmatpush2.msra.mxu0 %v1209
    %1275 = vmatprep.subr.mxu0 0.0
    %1276 = vmatpush2.msra.mxu0 %v1208
    %1277 = vmatprep.subr.mxu0 0.0
    %1278 = vmatpush2.msra.mxu0 %v1207
    %1279 = vmatprep.subr.mxu0 0.0
    %1280 = vmatpush2.msra.mxu0 %v1206
    %1281 = vmatprep.subr.mxu0 0.0
    %1282 = vmatpush2.msra.mxu0 %v1205
    %1283 = vmatprep.subr.mxu0 0.0
    %1284 = vmatpush2.msra.mxu0 %v1204
    %1285 = vmatprep.subr.mxu0 0.0
    %1286 = vmatpush2.msra.mxu0 %v1203
    %1287 = vmatprep.subr.mxu0 0.0
    %1288 = vmatpush2.msra.mxu0 %v1202
    %1289 = vmatprep.mubr.f32.mxu0 %v1185
    %1290 = vmatmul.mubr.f32.gmra.mxu0 %v1184
    %v1291 = vpop.f32.mrf.mxu0
    %v1292 = vadd.f32 %v1223, %v1291
    %v1293 = vpop.f32.mrf.mxu0
    %1294 = vdwg.mxu0
    %v1295 = vmax.f32 %v1292, 0.0
    %v1296 = vld [vmem:[%s12] sm:$0x1]
    %v1298 = vlaneseq
    %v1299 = vshrl.u32 %v1298, 7
    %v1300 = vsub.s32 0, %v1299
    %v1301 = vrot.slane %v1296, %v1300
    %v1303 = vmul.f32 %v1295, %v1301
    %vm1304 = vcmask 1041408
    %v1305 = vsel %vm1304, %v1303, 0.0
    %1306 = vadd.xlane.f32.xlu0 %v1305
    %v1307 = vpop.xlane.xlu0 %1306
    %v1308 = vld [vmem:[#allocation2] sm:$0x1]
    %v1310 = vlaneseq
    %v1311 = vshrl.u32 %v1310, 7
    %v1312 = vsub.s32 0, %v1311
    %v1313 = vrot.slane %v1308, %v1312
    %v1315 = vadd.f32 %v1307, %v1313
    %1317 = vset.pattern.permute.xlu0 0
    %1318 = vperm.xlu0 %1317, %v1315
    %v1319 = vpop.permute.xlu0 %1318
    %1321 = vst [vmem:[#allocation9] sm:$0x3] %v1319
    // Predicated region
    $region70: #{tpu_custom_call.1} parent=1 // pred_check
      _
    $region71: #{tpu_custom_call.1} parent=1 // pred_check_branch
      %1323 = sbr.rel (0) target = $region73
    $region72: #{tpu_custom_call.1} parent=1 // pred_region
      %s1325 = ssub.s32 32, 32
      %1326 = vsyncadd [#allocation5], %s1325
      %s1328 = sshll.u32 [#allocation9], 4
      %s1329 = int_to_ptr.vmem [resolvable:$true] %s1328
      %1331 = dma.vmem_to_hbm [thread:$0]  %s1329, 32, %s14, [#allocation5]
    $region73: #{tpu_custom_call.1} parent=1 // pred_fallthru
      _
    // Predicated region
    $region74: #{tpu_custom_call.1} parent=1 // pred_check
      _
    $region75: #{tpu_custom_call.1} parent=1 // pred_check_branch
      %1333 = sbr.rel (0) target = $region77
    $region76: #{tpu_custom_call.1} parent=1 // pred_region
      %1334 = dma.done [#allocation5], 32
    $region77: #{tpu_custom_call.1} parent=1 // pred_fallthru
      _
    %1335 = vsyncpa [#allocation4], 1
    %1336 = vsyncpa [#allocation7], 1
    %1337 = vsyncpa [#allocation5], 1

</llo_original>
